<compile_context>
chip_gen: v7x
topology: tpu7x:2x2x1
jax: 0.10.0
libtpu: 0.0.40
codegen_flags: <defaults>
</compile_context>

<pallas_src>
import jax
import jax.numpy as jnp
from jax import lax
from jax.experimental import pallas as pl
from jax.experimental.pallas import tpu as pltpu

LANE = 128          # TPU lane width; every packed fan-out is a multiple of this
OUT_LANES = 128     # output slab: actor probs in lanes 0:A, critic value in lane A


def _round_up(v, m):
    return (v + m - 1) // m * m


# ------------------------------- the kernel -------------------------------

def make_kernel(layout, action_size):
    """layout: name -> (row_offset, fan_in, fan_out, bias_row)  (static ints)."""
    A = action_size
    f32, bf16 = jnp.float32, jnp.bfloat16

    def kernel(x_ref, w_ref, b_ref, out_ref):
        nb, B, S = x_ref.shape          # (stacked batches per step, rows, state)
        M = nb * B                      # flattened row count for the linears

        def linear(h2, name):
            # h2: [M, fan_in] f32.  Weight/bias slices are (8,128)-tile aligned.
            r0, fi, fo, brow = layout[name]
            w = w_ref[r0:r0 + fi, 0:fo]                    # bf16 slab slice
            b = b_ref[brow:brow + 1, 0:fo]                 # f32 bias row
            return jnp.dot(h2.astype(bf16), w, preferred_element_type=f32) + b

        def softmax_last(x):
            # exact normalization (no approx reciprocal) -> rows sum to 1
            m = jnp.max(x, axis=-1, keepdims=True)
            e = jnp.exp(x - m)
            return e / jnp.sum(e, axis=-1, keepdims=True)

        def attention(qkv3):
            # qkv3: [nb, B, 3*F] f32, F a multiple of 128 (padded lanes are zero)
            F = qkv3.shape[-1] // 3
            q = qkv3[..., 0:F].astype(bf16)
            k = qkv3[..., F:2 * F].astype(bf16)
            v = qkv3[..., 2 * F:3 * F].astype(bf16)
            # batched contraction over the feature axis (no k transpose in layout)
            scores = jnp.einsum("nqd,nkd->nqk", q, k, preferred_element_type=f32)
            probs = softmax_last(scores)
            return jnp.einsum("nqk,nkd->nqd", probs.astype(bf16), v,
                              preferred_element_type=f32)

        x2 = x_ref[...].reshape(M, S)

        # --- layer 1 (fused): [actor.attn1 Wq|Wk|Wv | critic.fc1] share input x
        h1 = linear(x2, "a1f")                                       # [M, 512]
        c = jnp.maximum(h1[:, 3 * LANE:4 * LANE], 0.0)               # critic fc1+ReLU
        a = attention(h1[:, 0:3 * LANE].reshape(nb, B, 3 * LANE)).reshape(M, LANE)

        # --- actor trunk
        a = linear(a, "af1")                                         # [M, 128]
        a = attention(linear(a, "a2qkv").reshape(nb, B, 3 * LANE)).reshape(M, LANE)
        a = jnp.maximum(a, 0.0)                                      # ReLU
        a = jnp.maximum(linear(a, "af2"), 0.0)                       # [M,128] (0:64 real)

        # --- critic trunk
        c = jnp.maximum(linear(c, "cf2"), 0.0)                       # [M,128] (0:64 real)

        # --- fused output head -> one lane-dense [M, 128] slab
        ra, fia, foa, brow = layout["head_a"]
        rc, fic, foc, _ = layout["head_c"]
        head = (jnp.dot(a.astype(bf16), w_ref[ra:ra + fia, 0:foa],
                        preferred_element_type=f32)
                + jnp.dot(c.astype(bf16), w_ref[rc:rc + fic, 0:foc],
                          preferred_element_type=f32)
                + b_ref[brow:brow + 1, 0:foa])

        # exact softmax over the first A lanes only; lane A keeps the critic value
        lane = lax.broadcasted_iota(jnp.int32, (M, OUT_LANES), 1)
        is_act = lane < A
        masked = jnp.where(is_act, head, -1e30)
        m = jnp.max(masked, axis=-1, keepdims=True)
        e = jnp.exp(masked - m)
        probs = e / jnp.sum(e, axis=-1, keepdims=True)
        out_ref[...] = jnp.where(is_act, probs, head).reshape(nb, B, OUT_LANES)

    return kernel


# ---------------------------- parameter packing ----------------------------

def pack_params(params, state_size, action_size, weight_dtype=jnp.bfloat16):
    """Pack all layers into one bf16 weight slab + one f32 bias slab.

    Every fan-out is padded to a 128-lane multiple and every fan-in to the width
    the previous (padded) activation carries, so all kernel slices are tile
    aligned.  Layer fusions: [a1.Wq|a1.Wk|a1.Wv|critic.fc1] and the actor/critic
    heads targeting one lane-dense output slab.
    """
    S, A = state_size, action_size
    assert A + 1 <= OUT_LANES, "action_size + 1 must fit in the 128-lane output slab"
    assert S <= LANE, "this packing assumes state_size <= 128"

    def pad_to(w, rows, cols):
        return jnp.pad(w, ((0, rows - w.shape[0]), (0, cols - w.shape[1])))

    # fused layer 1: q | k | v | critic.fc1, each projection padded to 128 lanes
    w_a1f = jnp.concatenate([pad_to(params["a1_wq"], S, LANE),
                             pad_to(params["a1_wk"], S, LANE),
                             pad_to(params["a1_wv"], S, LANE),
                             pad_to(params["cf1_w"], S, LANE)], axis=1)
    b_a1f = jnp.concatenate([pad_to(params["a1_bq"], 1, LANE),
                             pad_to(params["a1_bk"], 1, LANE),
                             pad_to(params["a1_bv"], 1, LANE),
                             pad_to(params["cf1_b"], 1, LANE)], axis=1)

    w_af1 = pad_to(params["af1_w"], LANE, LANE)     # fan_in S -> 128 (zero rows)
    b_af1 = pad_to(params["af1_b"], 1, LANE)

    w_a2 = jnp.concatenate([params["a2_wq"], params["a2_wk"], params["a2_wv"]], axis=1)
    b_a2 = jnp.concatenate([params["a2_bq"], params["a2_bk"], params["a2_bv"]], axis=1)

    w_af2 = pad_to(params["af2_w"], LANE, LANE)     # fan_out 64 -> 128
    b_af2 = pad_to(params["af2_b"], 1, LANE)
    w_cf2 = pad_to(params["cf2_w"], LANE, LANE)
    b_cf2 = pad_to(params["cf2_b"], 1, LANE)

    # fused heads: actor logits -> lanes 0:A, critic value -> lane A
    w_ha = jnp.zeros((LANE, OUT_LANES), jnp.float32).at[:64, :A].set(params["af3_w"])
    w_hc = jnp.zeros((LANE, OUT_LANES), jnp.float32).at[:64, A:A + 1].set(params["cf3_w"])
    b_head = (jnp.zeros((1, OUT_LANES), jnp.float32)
              .at[:, :A].set(params["af3_b"])
              .at[:, A:A + 1].set(params["cf3_b"]))
    b_zero = jnp.zeros((1, OUT_LANES), jnp.float32)

    entries = [
        ("a1f", w_a1f, b_a1f),
        ("af1", w_af1, b_af1),
        ("a2qkv", w_a2, b_a2),
        ("af2", w_af2, b_af2),
        ("cf2", w_cf2, b_cf2),
        ("head_a", w_ha, b_head),     # shared head bias lives on this row
        ("head_c", w_hc, b_zero),     # bias already counted on head_a's row
    ]

    lw = _round_up(max(w.shape[1] for _, w, _ in entries), LANE)
    layout, w_blocks, b_rows, row = {}, [], [], 0
    for i, (name, w, b) in enumerate(entries):
        fi, fo = w.shape
        layout[name] = (row, fi, fo, i)
        w_blocks.append(jnp.pad(w, ((0, 0), (0, lw - fo))))
        b_rows.append(jnp.pad(b, ((0, 0), (0, lw - fo))))
        fi_pad = _round_up(fi, 8)
        if fi_pad != fi:
            w_blocks.append(jnp.zeros((fi_pad - fi, lw), jnp.float32))
        row += fi_pad

    w_slab = jnp.concatenate(w_blocks, axis=0)
    total_rows = _round_up(w_slab.shape[0], 8)
    if w_slab.shape[0] < total_rows:
        w_slab = jnp.pad(w_slab, ((0, total_rows - w_slab.shape[0]), (0, 0)))
    b_slab = jnp.concatenate(b_rows, axis=0)
    nbias = _round_up(b_slab.shape[0], 8)
    if b_slab.shape[0] < nbias:
        b_slab = jnp.pad(b_slab, ((0, nbias - b_slab.shape[0]), (0, 0)))

    return w_slab.astype(weight_dtype), b_slab.astype(jnp.float32), layout


# ------------------------------ host wrapper ------------------------------

def actor_critic_forward(x_stacked, w_slab, b_slab, layout, action_size,
                         block_batches=None):
    """x_stacked: [N, B, S] -- N independent batches; attention mixes rows only
    within a batch of B (exactly like the PyTorch module on 2-D input)."""
    N, B, S = x_stacked.shape
    if block_batches is None:
        # >= 2 grid steps feed both TensorCores on v7x; cap the per-step block so
        # activations stay far inside VMEM when N is large (per-step activation
        # footprint ~ Nb*B*(S+128)*4 B, double-buffered; set vmem_limit_bytes in
        # CompilerParams only if Nb is pushed into the thousands).
        block_batches = min(max(1, N // 2), 256)
    assert N % block_batches == 0, "stacked-batch count must divide block_batches"
    grid = (N // block_batches,)

    out = pl.pallas_call(
        make_kernel(layout, action_size),
        out_shape=jax.ShapeDtypeStruct((N, B, OUT_LANES), jnp.float32),
        grid=grid,
        in_specs=[
            pl.BlockSpec((block_batches, B, S), lambda g: (g, 0, 0)),  # activations
            pl.BlockSpec(w_slab.shape, lambda g: (0, 0)),   # VMEM-resident weights
            pl.BlockSpec(b_slab.shape, lambda g: (0, 0)),   # VMEM-resident biases
        ],
        out_specs=pl.BlockSpec((block_batches, B, OUT_LANES), lambda g: (g, 0, 0)),
        compiler_params=pltpu.CompilerParams(
            dimension_semantics=("parallel",)),
    )(x_stacked, w_slab, b_slab)

    act = out[:, :, :action_size]
    value = out[:, :, action_size:action_size + 1]
    return act, value


# --------------------------- deterministic init ---------------------------

def _linear_params(key, fan_in, fan_out):
    """PyTorch nn.Linear default init: U(-1/sqrt(in), 1/sqrt(in)).
    Weight is stored already transposed: [fan_in, fan_out]."""
    kw, kb = jax.random.split(key)
    bound = 1.0 / float(fan_in) ** 0.5
    w = jax.random.uniform(kw, (fan_in, fan_out), jnp.float32, -bound, bound)
    b = jax.random.uniform(kb, (1, fan_out), jnp.float32, -bound, bound)
    return w, b


def init_params(key, state_size, action_size):
    keys = jax.random.split(key, 12)
    p = {}
    p["a1_wq"], p["a1_bq"] = _linear_params(keys[0], state_size, state_size)
    p["a1_wk"], p["a1_bk"] = _linear_params(keys[1], state_size, state_size)
    p["a1_wv"], p["a1_bv"] = _linear_params(keys[2], state_size, state_size)
    p["af1_w"], p["af1_b"] = _linear_params(keys[3], state_size, 128)
    p["a2_wq"], p["a2_bq"] = _linear_params(keys[4], 128, 128)
    p["a2_wk"], p["a2_bk"] = _linear_params(keys[5], 128, 128)
    p["a2_wv"], p["a2_bv"] = _linear_params(keys[6], 128, 128)
    p["af2_w"], p["af2_b"] = _linear_params(keys[7], 128, 64)
    p["af3_w"], p["af3_b"] = _linear_params(keys[8], 64, action_size)
    p["cf1_w"], p["cf1_b"] = _linear_params(keys[9], state_size, 128)
    p["cf2_w"], p["cf2_b"] = _linear_params(keys[10], 128, 64)
    p["cf3_w"], p["cf3_b"] = _linear_params(keys[11], 64, 1)
    return p


# --------------------------- pure-JAX reference ---------------------------

def reference_forward(x, params, mm_dtype):
    """Reference with the same mixed-precision discipline as the kernel when
    mm_dtype=bfloat16 (operands cast at matmul boundaries, f32 accumulation);
    mm_dtype=float32 gives the exact PyTorch-module math."""
    f32 = jnp.float32

    def mm(a, w):
        return jnp.dot(a.astype(mm_dtype), w.astype(mm_dtype),
                       preferred_element_type=f32)

    def attn(h, pre):
        q = mm(h, params[pre + "_wq"]) + params[pre + "_bq"]
        k = mm(h, params[pre + "_wk"]) + params[pre + "_bk"]
        v = mm(h, params[pre + "_wv"]) + params[pre + "_bv"]
        w = jax.nn.softmax(mm(q, k.T), axis=-1)
        return mm(w, v)

    h = attn(x, "a1")
    h = mm(h, params["af1_w"]) + params["af1_b"]
    h = attn(h, "a2")
    h = jnp.maximum(h, 0.0)
    h = jnp.maximum(mm(h, params["af2_w"]) + params["af2_b"], 0.0)
    act = jax.nn.softmax(mm(h, params["af3_w"]) + params["af3_b"], axis=-1)
    c = jnp.maximum(mm(x, params["cf1_w"]) + params["cf1_b"], 0.0)
    c = jnp.maximum(mm(c, params["cf2_w"]) + params["cf2_b"], 0.0)
    val = mm(c, params["cf3_w"]) + params["cf3_b"]
    return act, val


if __name__ == "__main__":
    N_STACK, B, STATE_SIZE, ACTION_SIZE = 8, 8, 32, 8

    key = jax.random.PRNGKey(0)
    k_x, k_p = jax.random.split(key)
    # N_STACK independent batches of B samples (attention mixes rows only
    # WITHIN a batch of B, never across the stacked axis).
    x = jax.random.normal(k_x, (N_STACK, B, STATE_SIZE), jnp.float32)
    params = init_params(k_p, STATE_SIZE, ACTION_SIZE)
    w_slab, b_slab, layout = pack_params(params, STATE_SIZE, ACTION_SIZE)

    act, value = actor_critic_forward(x, w_slab, b_slab, layout, ACTION_SIZE)
    jax.block_until_ready((act, value))

    assert act.shape == (N_STACK, B, ACTION_SIZE)
    assert value.shape == (N_STACK, B, 1)
    # exact-divide softmax -> action rows sum to 1
    assert bool(jnp.allclose(jnp.sum(act, axis=-1), 1.0, atol=1e-4))

    # tight check vs. a reference using the same bf16-matmul discipline
    ref_bf = jax.vmap(lambda xb: reference_forward(xb, params, jnp.bfloat16))(x)
    assert bool(jnp.allclose(act, ref_bf[0], atol=3e-3, rtol=3e-3))
    assert bool(jnp.allclose(value, ref_bf[1], atol=3e-3, rtol=3e-3))

    # loose sanity check vs. the full-f32 module math
    ref_f32 = jax.vmap(lambda xb: reference_forward(xb, params, jnp.float32))(x)
    assert bool(jnp.allclose(act, ref_f32[0], atol=5e-2, rtol=5e-2))
    assert bool(jnp.allclose(value, ref_f32[1], atol=5e-2, rtol=5e-2))

    print("KERNEL_OK")
</pallas_src>

<mosaic_0001>
module attributes {stable_mosaic.version = 11 : i64} {
  func.func @kernel(%arg0: i32, %arg1: memref<4x8x32xf32, #tpu.memory_space<vmem>>, %arg2: memref<800x512xbf16, #tpu.memory_space<vmem>>, %arg3: memref<8x512xf32, #tpu.memory_space<vmem>>, %arg4: memref<4x8x128xf32, #tpu.memory_space<vmem>>) attributes {dimension_semantics = [#tpu.dimension_semantics<parallel>], iteration_bounds = array<i64: 2>, scalar_prefetch = 0 : i64, scratch_operands = 0 : i64, tpu.core_type = #tpu.core_type<tc>, window_params = [{transform_indices = @transform_0, window_bounds = array<i64: 4, 8, 32>}, {pipeline_mode = #tpu.pipeline_mode<synchronous>, transform_indices = @transform_1, window_bounds = array<i64: 800, 512>}, {pipeline_mode = #tpu.pipeline_mode<synchronous>, transform_indices = @transform_2, window_bounds = array<i64: 8, 512>}, {transform_indices = @transform_3, window_bounds = array<i64: 4, 8, 128>}]} {
    %c0 = arith.constant 0 : index
    %c0_0 = arith.constant 0 : index
    %c0_1 = arith.constant 0 : index
    %0 = vector.load %arg1[%c0, %c0_0, %c0_1] : memref<4x8x32xf32, #tpu.memory_space<vmem>>, vector<4x8x32xf32>
    %1 = vector.shape_cast %0 : vector<4x8x32xf32> to vector<32x32xf32>
    %c0_2 = arith.constant 0 : index
    %c0_3 = arith.constant 0 : index
    %2 = vector.load %arg2[%c0_2, %c0_3] : memref<800x512xbf16, #tpu.memory_space<vmem>>, vector<32x512xbf16>
    %c0_4 = arith.constant 0 : index
    %c0_5 = arith.constant 0 : index
    %3 = vector.load %arg3[%c0_4, %c0_5] : memref<8x512xf32, #tpu.memory_space<vmem>>, vector<1x512xf32>
    %4 = arith.truncf %1 : vector<32x32xf32> to vector<32x32xbf16>
    %cst = arith.constant dense<0.000000e+00> : vector<32x512xf32>
    %5 = tpu.matmul %4, %2, %cst {dimension_numbers = #tpu.dot_dimension_numbers<[1], [0], [0], [1], [0, 0, 1, 1], [], []>} : vector<32x32xbf16>, vector<32x512xbf16>, vector<32x512xf32> -> vector<32x512xf32>
    %6 = vector.broadcast %3 : vector<1x512xf32> to vector<32x512xf32>
    %7 = arith.addf %5, %6 : vector<32x512xf32>
    %8 = vector.extract_strided_slice %7 {offsets = [0, 384], sizes = [32, 128], strides = [1, 1]} : vector<32x512xf32> to vector<32x128xf32>
    %cst_6 = arith.constant 0.000000e+00 : f32
    %9 = vector.broadcast %cst_6 : f32 to vector<32x128xf32>
    %10 = arith.maximumf %8, %9 : vector<32x128xf32>
    %11 = vector.extract_strided_slice %7 {offsets = [0, 0], sizes = [32, 384], strides = [1, 1]} : vector<32x512xf32> to vector<32x384xf32>
    %12 = vector.shape_cast %11 : vector<32x384xf32> to vector<4x8x384xf32>
    %13 = vector.extract_strided_slice %12 {offsets = [0, 0, 0], sizes = [4, 8, 128], strides = [1, 1, 1]} : vector<4x8x384xf32> to vector<4x8x128xf32>
    %14 = arith.truncf %13 : vector<4x8x128xf32> to vector<4x8x128xbf16>
    %15 = vector.extract_strided_slice %12 {offsets = [0, 0, 128], sizes = [4, 8, 128], strides = [1, 1, 1]} : vector<4x8x384xf32> to vector<4x8x128xf32>
    %16 = arith.truncf %15 : vector<4x8x128xf32> to vector<4x8x128xbf16>
    %17 = vector.extract_strided_slice %12 {offsets = [0, 0, 256], sizes = [4, 8, 128], strides = [1, 1, 1]} : vector<4x8x384xf32> to vector<4x8x128xf32>
    %18 = arith.truncf %17 : vector<4x8x128xf32> to vector<4x8x128xbf16>
    "tpu.trace_start"() <{level = 10 : i32, message = "nqd,nkd->nqk"}> : () -> ()
    %cst_7 = arith.constant dense<0.000000e+00> : vector<4x8x8xf32>
    %19 = tpu.matmul %14, %16, %cst_7 {dimension_numbers = #tpu.dot_dimension_numbers<[2], [2], [1], [1], [0, 0, 0, 1, 1, 1], [0], [0]>} : vector<4x8x128xbf16>, vector<4x8x128xbf16>, vector<4x8x8xf32> -> vector<4x8x8xf32>
    "tpu.trace_stop"() : () -> ()
    %cst_8 = arith.constant dense<0xFF800000> : vector<4x8xf32>
    %20 = vector.multi_reduction <maximumf>, %19, %cst_8 [2] : vector<4x8x8xf32> to vector<4x8xf32>
    %21 = vector.shape_cast %20 : vector<4x8xf32> to vector<4x8x1xf32>
    %22 = vector.broadcast %21 : vector<4x8x1xf32> to vector<4x8x8xf32>
    %23 = arith.subf %19, %22 : vector<4x8x8xf32>
    %24 = math.exp %23 : vector<4x8x8xf32>
    %cst_9 = arith.constant dense<0.000000e+00> : vector<4x8xf32>
    %25 = vector.multi_reduction <add>, %24, %cst_9 [2] : vector<4x8x8xf32> to vector<4x8xf32>
    %26 = vector.shape_cast %25 : vector<4x8xf32> to vector<4x8x1xf32>
    %27 = vector.broadcast %26 : vector<4x8x1xf32> to vector<4x8x8xf32>
    %28 = arith.divf %24, %27 : vector<4x8x8xf32>
    %29 = arith.truncf %28 : vector<4x8x8xf32> to vector<4x8x8xbf16>
    "tpu.trace_start"() <{level = 10 : i32, message = "nqk,nkd->nqd"}> : () -> ()
    %cst_10 = arith.constant dense<0.000000e+00> : vector<4x8x128xf32>
    %30 = tpu.matmul %29, %18, %cst_10 {dimension_numbers = #tpu.dot_dimension_numbers<[2], [1], [1], [2], [0, 0, 0, 1, 1, 2], [0], [0]>} : vector<4x8x8xbf16>, vector<4x8x128xbf16>, vector<4x8x128xf32> -> vector<4x8x128xf32>
    "tpu.trace_stop"() : () -> ()
    %31 = vector.shape_cast %30 : vector<4x8x128xf32> to vector<32x128xf32>
    %c32 = arith.constant 32 : index
    %c0_11 = arith.constant 0 : index
    %32 = vector.load %arg2[%c32, %c0_11] : memref<800x512xbf16, #tpu.memory_space<vmem>>, vector<128x128xbf16>
    %c1 = arith.constant 1 : index
    %c0_12 = arith.constant 0 : index
    %33 = vector.load %arg3[%c1, %c0_12] : memref<8x512xf32, #tpu.memory_space<vmem>>, vector<1x128xf32>
    %34 = arith.truncf %31 : vector<32x128xf32> to vector<32x128xbf16>
    %cst_13 = arith.constant dense<0.000000e+00> : vector<32x128xf32>
    %35 = tpu.matmul %34, %32, %cst_13 {dimension_numbers = #tpu.dot_dimension_numbers<[1], [0], [0], [1], [0, 0, 1, 1], [], []>} : vector<32x128xbf16>, vector<128x128xbf16>, vector<32x128xf32> -> vector<32x128xf32>
    %36 = vector.broadcast %33 : vector<1x128xf32> to vector<32x128xf32>
    %37 = arith.addf %35, %36 : vector<32x128xf32>
    %c160 = arith.constant 160 : index
    %c0_14 = arith.constant 0 : index
    %38 = vector.load %arg2[%c160, %c0_14] : memref<800x512xbf16, #tpu.memory_space<vmem>>, vector<128x384xbf16>
    %c2 = arith.constant 2 : index
    %c0_15 = arith.constant 0 : index
    %39 = vector.load %arg3[%c2, %c0_15] : memref<8x512xf32, #tpu.memory_space<vmem>>, vector<1x384xf32>
    %40 = arith.truncf %37 : vector<32x128xf32> to vector<32x128xbf16>
    %cst_16 = arith.constant dense<0.000000e+00> : vector<32x384xf32>
    %41 = tpu.matmul %40, %38, %cst_16 {dimension_numbers = #tpu.dot_dimension_numbers<[1], [0], [0], [1], [0, 0, 1, 1], [], []>} : vector<32x128xbf16>, vector<128x384xbf16>, vector<32x384xf32> -> vector<32x384xf32>
    %42 = vector.broadcast %39 : vector<1x384xf32> to vector<32x384xf32>
    %43 = arith.addf %41, %42 : vector<32x384xf32>
    %44 = vector.shape_cast %43 : vector<32x384xf32> to vector<4x8x384xf32>
    %45 = vector.extract_strided_slice %44 {offsets = [0, 0, 0], sizes = [4, 8, 128], strides = [1, 1, 1]} : vector<4x8x384xf32> to vector<4x8x128xf32>
    %46 = arith.truncf %45 : vector<4x8x128xf32> to vector<4x8x128xbf16>
    %47 = vector.extract_strided_slice %44 {offsets = [0, 0, 128], sizes = [4, 8, 128], strides = [1, 1, 1]} : vector<4x8x384xf32> to vector<4x8x128xf32>
    %48 = arith.truncf %47 : vector<4x8x128xf32> to vector<4x8x128xbf16>
    %49 = vector.extract_strided_slice %44 {offsets = [0, 0, 256], sizes = [4, 8, 128], strides = [1, 1, 1]} : vector<4x8x384xf32> to vector<4x8x128xf32>
    %50 = arith.truncf %49 : vector<4x8x128xf32> to vector<4x8x128xbf16>
    "tpu.trace_start"() <{level = 10 : i32, message = "nqd,nkd->nqk"}> : () -> ()
    %cst_17 = arith.constant dense<0.000000e+00> : vector<4x8x8xf32>
    %51 = tpu.matmul %46, %48, %cst_17 {dimension_numbers = #tpu.dot_dimension_numbers<[2], [2], [1], [1], [0, 0, 0, 1, 1, 1], [0], [0]>} : vector<4x8x128xbf16>, vector<4x8x128xbf16>, vector<4x8x8xf32> -> vector<4x8x8xf32>
    "tpu.trace_stop"() : () -> ()
    %cst_18 = arith.constant dense<0xFF800000> : vector<4x8xf32>
    %52 = vector.multi_reduction <maximumf>, %51, %cst_18 [2] : vector<4x8x8xf32> to vector<4x8xf32>
    %53 = vector.shape_cast %52 : vector<4x8xf32> to vector<4x8x1xf32>
    %54 = vector.broadcast %53 : vector<4x8x1xf32> to vector<4x8x8xf32>
    %55 = arith.subf %51, %54 : vector<4x8x8xf32>
    %56 = math.exp %55 : vector<4x8x8xf32>
    %cst_19 = arith.constant dense<0.000000e+00> : vector<4x8xf32>
    %57 = vector.multi_reduction <add>, %56, %cst_19 [2] : vector<4x8x8xf32> to vector<4x8xf32>
    %58 = vector.shape_cast %57 : vector<4x8xf32> to vector<4x8x1xf32>
    %59 = vector.broadcast %58 : vector<4x8x1xf32> to vector<4x8x8xf32>
    %60 = arith.divf %56, %59 : vector<4x8x8xf32>
    %61 = arith.truncf %60 : vector<4x8x8xf32> to vector<4x8x8xbf16>
    "tpu.trace_start"() <{level = 10 : i32, message = "nqk,nkd->nqd"}> : () -> ()
    %cst_20 = arith.constant dense<0.000000e+00> : vector<4x8x128xf32>
    %62 = tpu.matmul %61, %50, %cst_20 {dimension_numbers = #tpu.dot_dimension_numbers<[2], [1], [1], [2], [0, 0, 0, 1, 1, 2], [0], [0]>} : vector<4x8x8xbf16>, vector<4x8x128xbf16>, vector<4x8x128xf32> -> vector<4x8x128xf32>
    "tpu.trace_stop"() : () -> ()
    %63 = vector.shape_cast %62 : vector<4x8x128xf32> to vector<32x128xf32>
    %cst_21 = arith.constant 0.000000e+00 : f32
    %64 = vector.broadcast %cst_21 : f32 to vector<32x128xf32>
    %65 = arith.maximumf %63, %64 : vector<32x128xf32>
    %c288 = arith.constant 288 : index
    %c0_22 = arith.constant 0 : index
    %66 = vector.load %arg2[%c288, %c0_22] : memref<800x512xbf16, #tpu.memory_space<vmem>>, vector<128x128xbf16>
    %c3 = arith.constant 3 : index
    %c0_23 = arith.constant 0 : index
    %67 = vector.load %arg3[%c3, %c0_23] : memref<8x512xf32, #tpu.memory_space<vmem>>, vector<1x128xf32>
    %68 = arith.truncf %65 : vector<32x128xf32> to vector<32x128xbf16>
    %cst_24 = arith.constant dense<0.000000e+00> : vector<32x128xf32>
    %69 = tpu.matmul %68, %66, %cst_24 {dimension_numbers = #tpu.dot_dimension_numbers<[1], [0], [0], [1], [0, 0, 1, 1], [], []>} : vector<32x128xbf16>, vector<128x128xbf16>, vector<32x128xf32> -> vector<32x128xf32>
    %70 = vector.broadcast %67 : vector<1x128xf32> to vector<32x128xf32>
    %71 = arith.addf %69, %70 : vector<32x128xf32>
    %cst_25 = arith.constant 0.000000e+00 : f32
    %72 = vector.broadcast %cst_25 : f32 to vector<32x128xf32>
    %73 = arith.maximumf %71, %72 : vector<32x128xf32>
    %c416 = arith.constant 416 : index
    %c0_26 = arith.constant 0 : index
    %74 = vector.load %arg2[%c416, %c0_26] : memref<800x512xbf16, #tpu.memory_space<vmem>>, vector<128x128xbf16>
    %c4 = arith.constant 4 : index
    %c0_27 = arith.constant 0 : index
    %75 = vector.load %arg3[%c4, %c0_27] : memref<8x512xf32, #tpu.memory_space<vmem>>, vector<1x128xf32>
    %76 = arith.truncf %10 : vector<32x128xf32> to vector<32x128xbf16>
    %cst_28 = arith.constant dense<0.000000e+00> : vector<32x128xf32>
    %77 = tpu.matmul %76, %74, %cst_28 {dimension_numbers = #tpu.dot_dimension_numbers<[1], [0], [0], [1], [0, 0, 1, 1], [], []>} : vector<32x128xbf16>, vector<128x128xbf16>, vector<32x128xf32> -> vector<32x128xf32>
    %78 = vector.broadcast %75 : vector<1x128xf32> to vector<32x128xf32>
    %79 = arith.addf %77, %78 : vector<32x128xf32>
    %cst_29 = arith.constant 0.000000e+00 : f32
    %80 = vector.broadcast %cst_29 : f32 to vector<32x128xf32>
    %81 = arith.maximumf %79, %80 : vector<32x128xf32>
    %82 = arith.truncf %73 : vector<32x128xf32> to vector<32x128xbf16>
    %c544 = arith.constant 544 : index
    %c0_30 = arith.constant 0 : index
    %83 = vector.load %arg2[%c544, %c0_30] : memref<800x512xbf16, #tpu.memory_space<vmem>>, vector<128x128xbf16>
    %cst_31 = arith.constant dense<0.000000e+00> : vector<32x128xf32>
    %84 = tpu.matmul %82, %83, %cst_31 {dimension_numbers = #tpu.dot_dimension_numbers<[1], [0], [0], [1], [0, 0, 1, 1], [], []>} : vector<32x128xbf16>, vector<128x128xbf16>, vector<32x128xf32> -> vector<32x128xf32>
    %85 = arith.truncf %81 : vector<32x128xf32> to vector<32x128xbf16>
    %c672 = arith.constant 672 : index
    %c0_32 = arith.constant 0 : index
    %86 = vector.load %arg2[%c672, %c0_32] : memref<800x512xbf16, #tpu.memory_space<vmem>>, vector<128x128xbf16>
    %cst_33 = arith.constant dense<0.000000e+00> : vector<32x128xf32>
    %87 = tpu.matmul %85, %86, %cst_33 {dimension_numbers = #tpu.dot_dimension_numbers<[1], [0], [0], [1], [0, 0, 1, 1], [], []>} : vector<32x128xbf16>, vector<128x128xbf16>, vector<32x128xf32> -> vector<32x128xf32>
    %88 = arith.addf %84, %87 : vector<32x128xf32>
    %c5 = arith.constant 5 : index
    %c0_34 = arith.constant 0 : index
    %89 = vector.load %arg3[%c5, %c0_34] : memref<8x512xf32, #tpu.memory_space<vmem>>, vector<1x128xf32>
    %90 = vector.broadcast %89 : vector<1x128xf32> to vector<32x128xf32>
    %91 = arith.addf %88, %90 : vector<32x128xf32>
    %92 = tpu.iota {dimensions = array<i32: 1>} : vector<32x128xi32>
    %c8_i32 = arith.constant 8 : i32
    %93 = vector.broadcast %c8_i32 : i32 to vector<32x128xi32>
    %94 = arith.cmpi slt, %92, %93 : vector<32x128xi32>
    %cst_35 = arith.constant -1.000000e+30 : f32
    %95 = vector.broadcast %cst_35 : f32 to vector<32x128xf32>
    %96 = arith.select %94, %91, %95 : vector<32x128xi1>, vector<32x128xf32>
    %cst_36 = arith.constant dense<0xFF800000> : vector<32xf32>
    %97 = vector.multi_reduction <maximumf>, %96, %cst_36 [1] : vector<32x128xf32> to vector<32xf32>
    %98 = vector.shape_cast %97 : vector<32xf32> to vector<32x1xf32>
    %99 = vector.broadcast %98 : vector<32x1xf32> to vector<32x128xf32>
    %100 = arith.subf %96, %99 : vector<32x128xf32>
    %101 = math.exp %100 : vector<32x128xf32>
    %cst_37 = arith.constant dense<0.000000e+00> : vector<32xf32>
    %102 = vector.multi_reduction <add>, %101, %cst_37 [1] : vector<32x128xf32> to vector<32xf32>
    %103 = vector.shape_cast %102 : vector<32xf32> to vector<32x1xf32>
    %104 = vector.broadcast %103 : vector<32x1xf32> to vector<32x128xf32>
    %105 = arith.divf %101, %104 : vector<32x128xf32>
    %106 = arith.select %94, %105, %91 : vector<32x128xi1>, vector<32x128xf32>
    %107 = vector.shape_cast %106 : vector<32x128xf32> to vector<4x8x128xf32>
    %c0_38 = arith.constant 0 : index
    %c0_39 = arith.constant 0 : index
    %c0_40 = arith.constant 0 : index
    %108 = vector.load %arg4[%c0_38, %c0_39, %c0_40] : memref<4x8x128xf32, #tpu.memory_space<vmem>>, vector<4x8x128xf32>
    tpu.vector_store %arg4[%c0_38, %c0_39, %c0_40], %107 {strides = array<i32>} : memref<4x8x128xf32, #tpu.memory_space<vmem>>, vector<4x8x128xf32>,
    return
  }
  func.func @transform_0(%arg0: i32) -> (i32, i32, i32) {
    %c0_i32 = arith.constant 0 : i32
    %c0_i32_0 = arith.constant 0 : i32
    %c0_i32_1 = arith.constant 0 : i32
    return %arg0, %c0_i32, %c0_i32_0 : i32, i32, i32
  }
  func.func @transform_1(%arg0: i32) -> (i32, i32) {
    %c0_i32 = arith.constant 0 : i32
    %c0_i32_0 = arith.constant 0 : i32
    %c0_i32_1 = arith.constant 0 : i32
    return %c0_i32, %c0_i32_0 : i32, i32
  }
  func.func @transform_2(%arg0: i32) -> (i32, i32) {
    %c0_i32 = arith.constant 0 : i32
    %c0_i32_0 = arith.constant 0 : i32
    %c0_i32_1 = arith.constant 0 : i32
    return %c0_i32, %c0_i32_0 : i32, i32
  }
  func.func @transform_3(%arg0: i32) -> (i32, i32, i32) {
    %c0_i32 = arith.constant 0 : i32
    %c0_i32_0 = arith.constant 0 : i32
    %c0_i32_1 = arith.constant 0 : i32
    return %arg0, %c0_i32, %c0_i32_0 : i32, i32, i32
  }
}

</mosaic_0001>

<llo_original>
// kernel: tpu_custom_call.1
$region0: #{tpu_custom_call.1}
  #allocation0 [shape = 'u32[]', space=smem, size = 0x4, offset = 0x4, fixed_abs, tag = 'smem constant byte address 0x4 - core index']
  #allocation1 [shape = 'u32[144,128]{1,0:T(1,128)}', space=vmem, size = 0x12000, scoped, tag = 'internal scratch']
  %s0 = inlined_call_operand.hbm [shape: f32[8,8,32], index: 0, kind: input, shape index: {}]
  %s1 = inlined_call_operand.hbm [shape: bf16[800,512], index: 1, kind: input, shape index: {}]
  %s2 = inlined_call_operand.hbm [shape: f32[8,512], index: 2, kind: input, shape index: {}]
  %s3 = inlined_call_operand.hbm [shape: f32[8,8,128], index: 3, kind: output, shape index: {}]
  %s4 = sld [smem:[#allocation0]]
  $region57: #{tpu_custom_call.1} parent=0
    _
  %s6 = ssub.s32 1, %s4
  %s7 = scalar_select 0, %s6, %s4
  $region1: #{tpu_custom_call.1} parent=0
    #allocation2 [shape = 'u8[32768]{0}', space=vmem, size = 0x8000, scoped, tag = 'input window, operand 0']
    #allocation3 [shape = 's32[2]{0}', space=sflag, size = 0x8, scoped, tag = 'scoped memory for tpu_custom_call.1']
    #allocation4 [shape = 's32[2]{0}', space=sflag, size = 0x8, scoped, tag = 'scoped memory for tpu_custom_call.1']
    #allocation5 [shape = 'u8[819200]{0}', space=vmem, size = 0xc8000, scoped, tag = 'input window, operand 1, single buffered']
    #allocation6 [shape = 's32[1]{0}', space=sflag, size = 0x4, scoped, tag = 'scoped memory for tpu_custom_call.1']
    #allocation7 [shape = 'u8[16384]{0}', space=vmem, size = 0x4000, scoped, tag = 'input window, operand 2, single buffered']
    #allocation8 [shape = 'u8[32768]{0}', space=vmem, size = 0x8000, scoped, tag = 'output window, operand 0']
    %8 = vsyncpa [#allocation3], 0
    %s9 = scalar_lea.sflag [#allocation3], 1
    %10 = vsyncpa %s9, 0
    %11 = vsyncpa [#allocation6], 0
    %12 = vsyncpa [#allocation4], 0
    %s13 = scalar_lea.sflag [#allocation4], 1
    %14 = vsyncpa %s13, 0
    loop: start=0, step=1, limit=4
    $region2: #{tpu_custom_call.1} parent=1 // loop_pre_header
      _
    $region3: #{tpu_custom_call.1} parent=1 // loop_header
      %s16 = sphi 0, %s20
      %p17 = scmp.ge.s32.totalorder %s16, 4
      %s26 = sphi 0, %s28
      %s29 = sphi 0, %s26
      %s30 = sphi 0, %s29
      %s46 = sphi 0, %s30
      %s50 = sphi 0, %s50
      %s52 = sphi 0, %s50
      %s53 = sphi 0, %s52
      %s67 = sphi 0, %s53
      %s71 = sphi 0, %s71
      %s73 = sphi 0, %s71
      %s74 = sphi 0, %s73
      %s88 = sphi 0, %s74
      %s94 = sphi 0, %s96
      %s97 = sphi 0, %s94
      %s98 = sphi 0, %s97
      %s114 = sphi 0, %s98
    $region4: #{tpu_custom_call.1} parent=1 // loop_header_branch
      %19 = sbr.rel (%p17) target = $region8
    $region5: #{tpu_custom_call.1} parent=1 // loop_body
      %s21 = ssub.s32 %s16, 1
      %s22 = ssub.s32 %s16, 2
      %s23 = sadd.s32 %s16, 1
      %s24 = ssub.s32 %s16, %s23
      %p25 = scmp.eq.s32.totalorder %s24, 0
      %s27 = sadd.s32 %s26, 1
      %s28 = scalar_select %p25, %s26, %s27
      %p31 = pneg %p25
      %p32 = scmp.eq.s32.totalorder %s16, 1
      %p33 = por %p31, %p32
      %p34 = scmp.ne.s32.totalorder %s26, %s29
      %p35 = scmp.eq.s32.totalorder %s16, 0
      %p36 = por %p34, %p35
      %p37 = scmp.ne.s32.totalorder %s26, %s29
      %p38 = scmp.eq.s32.totalorder %s21, 1
      %p39 = por %p37, %p38
      %p40 = scmp.ne.s32.totalorder %s29, %s30
      %p41 = scmp.eq.s32.totalorder %s21, 0
      %p42 = por %p40, %p41
      %p43 = scmp.ne.s32.totalorder %s29, %s30
      %p44 = scmp.eq.s32.totalorder %s22, 1
      %p45 = por %p43, %p44
      %p47 = scmp.ne.s32.totalorder %s30, %s46
      %p48 = scmp.eq.s32.totalorder %s22, 0
      %p49 = por %p47, %p48
      %s51 = sadd.s32 %s50, 1
      %p54 = scmp.eq.s32.totalorder %s16, 1
      %p55 = scmp.ne.s32.totalorder %s50, %s52
      %p56 = scmp.eq.s32.totalorder %s16, 0
      %p57 = por %p55, %p56
      %p58 = scmp.ne.s32.totalorder %s50, %s52
      %p59 = scmp.eq.s32.totalorder %s21, 1
      %p60 = por %p58, %p59
      %p61 = scmp.ne.s32.totalorder %s52, %s53
      %p62 = scmp.eq.s32.totalorder %s21, 0
      %p63 = por %p61, %p62
      %p64 = scmp.ne.s32.totalorder %s52, %s53
      %p65 = scmp.eq.s32.totalorder %s22, 1
      %p66 = por %p64, %p65
      %p68 = scmp.ne.s32.totalorder %s53, %s67
      %p69 = scmp.eq.s32.totalorder %s22, 0
      %p70 = por %p68, %p69
      %s72 = sadd.s32 %s71, 1
      %p75 = scmp.eq.s32.totalorder %s16, 1
      %p76 = scmp.ne.s32.totalorder %s71, %s73
      %p77 = scmp.eq.s32.totalorder %s16, 0
      %p78 = por %p76, %p77
      %p79 = scmp.ne.s32.totalorder %s71, %s73
      %p80 = scmp.eq.s32.totalorder %s21, 1
      %p81 = por %p79, %p80
      %p82 = scmp.ne.s32.totalorder %s73, %s74
      %p83 = scmp.eq.s32.totalorder %s21, 0
      %p84 = por %p82, %p83
      %p85 = scmp.ne.s32.totalorder %s73, %s74
      %p86 = scmp.eq.s32.totalorder %s22, 1
      %p87 = por %p85, %p86
      %p89 = scmp.ne.s32.totalorder %s74, %s88
      %p90 = scmp.eq.s32.totalorder %s22, 0
      %p91 = por %p89, %p90
      %s92 = ssub.s32 %s16, %s23
      %p93 = scmp.eq.s32.totalorder %s92, 0
      %s95 = sadd.s32 %s94, 1
      %s96 = scalar_select %p93, %s94, %s95
      %p99 = pneg %p93
      %p100 = scmp.eq.s32.totalorder %s16, 1
      %p101 = por %p99, %p100
      %p102 = scmp.ne.s32.totalorder %s94, %s97
      %p103 = scmp.eq.s32.totalorder %s16, 0
      %p104 = por %p102, %p103
      %p105 = scmp.ne.s32.totalorder %s94, %s97
      %p106 = scmp.eq.s32.totalorder %s21, 1
      %p107 = por %p105, %p106
      %p108 = scmp.ne.s32.totalorder %s97, %s98
      %p109 = scmp.eq.s32.totalorder %s21, 0
      %p110 = por %p108, %p109
      %p111 = scmp.ne.s32.totalorder %s97, %s98
      %p112 = scmp.eq.s32.totalorder %s22, 1
      %p113 = por %p111, %p112
      %p115 = scmp.ne.s32.totalorder %s98, %s114
      %p116 = scmp.eq.s32.totalorder %s22, 0
      %p117 = por %p115, %p116
      %p118 = scmp.le.s32.totalorder 1, %s16
      %p119 = scmp.lt.s32.totalorder %s16, 3
      %p120 = pnand %p118, %p119
      %p121 = pneg %p120
      // Predicated region
      $region9: #{tpu_custom_call.1} parent=5 // pred_check
        _
      $region10: #{tpu_custom_call.1} parent=5 // pred_check_branch
        %123 = sbr.rel (%p120) target = $region12
      $region11: #{tpu_custom_call.1} parent=5 // pred_region
        %s124 = ssub.s32 %s16, 1
        // Predicated region
        $region13: #{tpu_custom_call.1} parent=11 // pred_check
          %p125 = pneg %p63
        $region14: #{tpu_custom_call.1} parent=11 // pred_check_branch
          %127 = sbr.rel (%p125) target = $region16
        $region15: #{tpu_custom_call.1} parent=11 // pred_region
          %s129 = ssub.s32 25600, 25600
          %130 = vsyncadd [#allocation6], %s129
          %s131 = sshll.u32 [#allocation5], 4
          %s132 = int_to_ptr.vmem [resolvable:$true] %s131
          %137 = dma.hbm_to_vmem [thread:$0]  %s1, 25600, %s132, [#allocation6], 256, 256, 16
        $region16: #{tpu_custom_call.1} parent=11 // pred_fallthru
          _
        // Predicated region
        $region17: #{tpu_custom_call.1} parent=11 // pred_check
          %p138 = pneg %p84
        $region18: #{tpu_custom_call.1} parent=11 // pred_check_branch
          %140 = sbr.rel (%p138) target = $region20
        $region19: #{tpu_custom_call.1} parent=11 // pred_region
          %s142 = ssub.s32 512, 512
          %143 = vsyncadd [#allocation6], %s142
          %s145 = sshll.u32 [#allocation7], 4
          %s146 = int_to_ptr.vmem [resolvable:$true] %s145
          %148 = dma.hbm_to_vmem [thread:$0]  %s2, 512, %s146, [#allocation6]
        $region20: #{tpu_custom_call.1} parent=11 // pred_fallthru
          _
      $region12: #{tpu_custom_call.1} parent=5 // pred_fallthru
        _
      %p149 = scmp.lt.s32.totalorder %s16, 2
      // Predicated region
      $region21: #{tpu_custom_call.1} parent=5 // pred_check
        %p150 = pneg %p149
      $region22: #{tpu_custom_call.1} parent=5 // pred_check_branch
        %152 = sbr.rel (%p150) target = $region24
      $region23: #{tpu_custom_call.1} parent=5 // pred_region
        // Predicated region
        $region25: #{tpu_custom_call.1} parent=23 // pred_check
          %p153 = pneg %p36
        $region26: #{tpu_custom_call.1} parent=23 // pred_check_branch
          %155 = sbr.rel (%p153) target = $region28
        $region27: #{tpu_custom_call.1} parent=23 // pred_region
          %s156 = sand.u32 %s26, 1
          %s157 = scalar_lea.sflag [#allocation3], %s156
          %s158 = sand.u32 %s26, 1
          %s159 = smul.addr %s158, 32
          %s160 = scalar_lea.vmem [#allocation2], %s159
          %s161 = smul.u32 4, %s16
          %s163 = ssub.s32 512, 512
          %164 = vsyncadd %s157, %s163
          %s165 = smul.addr %s161, 128
          %s166 = scalar_lea.hbm %s0, %s165
          %s167 = sshll.u32 %s160, 4
          %s168 = int_to_ptr.vmem [resolvable:$true] %s167
          %173 = dma.hbm_to_vmem [thread:$0]  %s166, 512, %s168, %s157, 128, 128, 8
        $region28: #{tpu_custom_call.1} parent=23 // pred_fallthru
          _
      $region24: #{tpu_custom_call.1} parent=5 // pred_fallthru
        _
      %p174 = scmp.le.s32.totalorder 1, %s16
      %p175 = scmp.lt.s32.totalorder %s16, 3
      %p176 = pnand %p174, %p175
      %p177 = pneg %p176
      // Predicated region
      $region29: #{tpu_custom_call.1} parent=5 // pred_check
        _
      $region30: #{tpu_custom_call.1} parent=5 // pred_check_branch
        %179 = sbr.rel (%p176) target = $region32
      $region31: #{tpu_custom_call.1} parent=5 // pred_region
        %s180 = ssub.s32 %s16, 1
        %s181 = sand.u32 %s29, 1
        %s182 = scalar_lea.sflag [#allocation3], %s181
        %s183 = sand.u32 %s29, 1
        %s184 = smul.addr %s183, 32
        %s185 = scalar_lea.vmem [#allocation2], %s184
        // Predicated region
        $region33: #{tpu_custom_call.1} parent=31 // pred_check
          %p186 = pneg %p42
        $region34: #{tpu_custom_call.1} parent=31 // pred_check_branch
          %188 = sbr.rel (%p186) target = $region36
        $region35: #{tpu_custom_call.1} parent=31 // pred_region
          %189 = dma.done %s182, 512
        $region36: #{tpu_custom_call.1} parent=31 // pred_fallthru
          _
        // Predicated region
        $region37: #{tpu_custom_call.1} parent=31 // pred_check
          %p190 = pneg %p63
        $region38: #{tpu_custom_call.1} parent=31 // pred_check_branch
          %192 = sbr.rel (%p190) target = $region40
        $region39: #{tpu_custom_call.1} parent=31 // pred_region
          %193 = dma.done [#allocation6], 25600
        $region40: #{tpu_custom_call.1} parent=31 // pred_fallthru
          _
        // Predicated region
        $region41: #{tpu_custom_call.1} parent=31 // pred_check
          %p194 = pneg %p84
        $region42: #{tpu_custom_call.1} parent=31 // pred_check_branch
          %196 = sbr.rel (%p194) target = $region44
        $region43: #{tpu_custom_call.1} parent=31 // pred_region
          %197 = dma.done [#allocation6], 512
        $region44: #{tpu_custom_call.1} parent=31 // pred_fallthru
          _
        %s198 = sand.u32 %s29, 1
        %s199 = scalar_lea.sflag [#allocation3], %s198
        %s200 = sand.u32 %s29, 1
        %s201 = smul.addr %s200, 32
        %s202 = scalar_lea.vmem [#allocation2], %s201
        %p203 = pneg %p42
        %p204 = pneg %p39
        %p205 = pneg %p63
        %p206 = pneg %p60
        %p207 = pneg %p84
        %p208 = pneg %p81
        %p209 = pneg %p110
        %p210 = pneg %p107
        %s211 = sand.u32 %s97, 1
        %s212 = scalar_lea.sflag [#allocation4], %s211
        %s213 = sand.u32 %s97, 1
        %s214 = smul.addr %s213, 32
        %s215 = scalar_lea.vmem [#allocation8], %s214
        %s216 = smul.u32 4, %s21
        %s217 = smul.u32 4, %s21
        %v219 = vld [vmem:[%s185] sm:$0xff]
        %v220 = vld [vmem:[%s185 + $0x8] sm:$0xff]
        %v221 = vld [vmem:[%s185 + $0x10] sm:$0xff]
        %v222 = vld [vmem:[%s185 + $0x18] sm:$0xff]
        %v223 = vld [vmem:[#allocation5] sm:$0xff]
        %v224 = vld [vmem:[#allocation5 + $0x8] sm:$0xff]
        %v225 = vld [vmem:[#allocation5 + $0x10] sm:$0xff]
        %v226 = vld [vmem:[#allocation5 + $0x18] sm:$0xff]
        %v227 = vld [vmem:[#allocation5 + $0x20] sm:$0xff]
        %v228 = vld [vmem:[#allocation5 + $0x28] sm:$0xff]
        %v229 = vld [vmem:[#allocation5 + $0x30] sm:$0xff]
        %v230 = vld [vmem:[#allocation5 + $0x38] sm:$0xff]
        %v231 = vld [vmem:[#allocation7] ss:$8 sm:$0xf]
        %v232 = vpack.c.bf16 %v220, %v219
        %v233 = vpack.c.bf16 %v222, %v221
        %v235 = vlaneseq
        %v236 = vshrl.u32 %v235, 7
        %v237 = vsub.s32 0, %v236
        %v238 = vrot.slane %v231, %v237
        %v239 = vlaneseq
        %v240 = vshrl.u32 %v239, 7
        %v241 = vsub.s32 1, %v240
        %v242 = vrot.slane %v231, %v241
        %v243 = vlaneseq
        %v244 = vshrl.u32 %v243, 7
        %v245 = vsub.s32 2, %v244
        %v246 = vrot.slane %v231, %v245
        %v247 = vlaneseq
        %v248 = vshrl.u32 %v247, 7
        %v249 = vsub.s32 3, %v248
        %v250 = vrot.slane %v231, %v249
        %v263 = vunpack.c.l.b16 %v223
        %v264 = vunpack.c.h.b16 %v223
        %v265 = vunpack.c.l.b16 %v224
        %v266 = vunpack.c.h.b16 %v224
        %v267 = vunpack.c.l.b16 %v225
        %v268 = vunpack.c.h.b16 %v225
        %v269 = vunpack.c.l.b16 %v226
        %v270 = vunpack.c.h.b16 %v226
        %v271 = vunpack.c.l.b16 %v227
        %v272 = vunpack.c.h.b16 %v227
        %v273 = vunpack.c.l.b16 %v228
        %v274 = vunpack.c.h.b16 %v228
        %v275 = vunpack.c.l.b16 %v229
        %v276 = vunpack.c.h.b16 %v229
        %v277 = vunpack.c.l.b16 %v230
        %v278 = vunpack.c.h.b16 %v230
        %v279 = vpack.c.b16 %v267, %v263
        %v280 = vpack.c.b16 %v268, %v264
        %v281 = vpack.c.b16 %v269, %v265
        %v282 = vpack.c.b16 %v270, %v266
        %v283 = vpack.c.b16 %v275, %v271
        %v284 = vpack.c.b16 %v276, %v272
        %v285 = vpack.c.b16 %v277, %v273
        %v286 = vpack.c.b16 %v278, %v274
        %vm295 = vcmask 261120
        %v297 = vsel %vm295, %v232, 0
        %v300 = vsel %vm295, %v233, 0
        %302 = vmatprep.subr.bf16.mxu0 %v280
        %303 = vmatpush1.bf16.msra.mxu0 %v279
        %304 = vmatprep.subr.bf16.mxu0 %v284
        %305 = vmatpush1.bf16.msra.mxu0 %v283
        %306 = vmatprep.subr.bf16.mxu0 0
        %307 = vmatpush1.bf16.msra.mxu0 0
        %308 = vmatprep.subr.bf16.mxu0 0
        %309 = vmatpush1.bf16.msra.mxu0 0
        %310 = vmatprep.subr.bf16.mxu0 0
        %311 = vmatpush1.bf16.msra.mxu0 0
        %312 = vmatprep.subr.bf16.mxu0 0
        %313 = vmatpush1.bf16.msra.mxu0 0
        %314 = vmatprep.subr.bf16.mxu0 0
        %315 = vmatpush1.bf16.msra.mxu0 0
        %316 = vmatprep.subr.bf16.mxu0 0
        %317 = vmatpush1.bf16.msra.mxu0 0
        %318 = vmatprep.subr.bf16.mxu0 0
        %319 = vmatpush1.bf16.msra.mxu0 0
        %320 = vmatprep.subr.bf16.mxu0 0
        %321 = vmatpush1.bf16.msra.mxu0 0
        %322 = vmatprep.subr.bf16.mxu0 0
        %323 = vmatpush1.bf16.msra.mxu0 0
        %324 = vmatprep.subr.bf16.mxu0 0
        %325 = vmatpush1.bf16.msra.mxu0 0
        %326 = vmatprep.subr.bf16.mxu0 0
        %327 = vmatpush1.bf16.msra.mxu0 0
        %328 = vmatprep.subr.bf16.mxu0 0
        %329 = vmatpush1.bf16.msra.mxu0 0
        %330 = vmatprep.subr.bf16.mxu0 0
        %331 = vmatpush1.bf16.msra.mxu0 0
        %332 = vmatprep.subr.bf16.mxu0 0
        %333 = vmatpush1.bf16.msra.mxu0 0
        %334 = vmatprep.mubr.bf16.mxu0 0
        %335 = vmatmul.mubr.bf16.gmra.mrb[0].mxu0 %v297
        %v336 = vpop.f32.mrb[0].mxu0
        %v337 = vadd.f32 %v238, %v336
        %v338 = vpop.f32.mrb[0].mxu0
        %v339 = vadd.f32 %v242, %v338
        %v340 = vpop.f32.mrb[0].mxu0
        %v341 = vadd.f32 %v238, %v340
        %v342 = vpop.f32.mrb[0].mxu0
        %v343 = vadd.f32 %v242, %v342
        %344 = vmatprep.mubr.bf16.mxu0 0
        %345 = vmatmul.mubr.bf16.gmra.mrb[0].mxu0 %v300
        %v346 = vpop.f32.mrb[0].mxu0
        %v347 = vadd.f32 %v238, %v346
        %v348 = vpop.f32.mrb[0].mxu0
        %v349 = vadd.f32 %v242, %v348
        %v350 = vpop.f32.mrb[0].mxu0
        %v351 = vadd.f32 %v238, %v350
        %v352 = vpop.f32.mrb[0].mxu0
        %v353 = vadd.f32 %v242, %v352
        %354 = vdwg.mxu0
        %355 = vmatprep.subr.bf16.mxu0 %v282
        %356 = vmatpush1.bf16.msra.mxu0 %v281
        %357 = vmatprep.subr.bf16.mxu0 %v286
        %358 = vmatpush1.bf16.msra.mxu0 %v285
        %359 = vmatprep.subr.bf16.mxu0 0
        %360 = vmatpush1.bf16.msra.mxu0 0
        %361 = vmatprep.subr.bf16.mxu0 0
        %362 = vmatpush1.bf16.msra.mxu0 0
        %363 = vmatprep.subr.bf16.mxu0 0
        %364 = vmatpush1.bf16.msra.mxu0 0
        %365 = vmatprep.subr.bf16.mxu0 0
        %366 = vmatpush1.bf16.msra.mxu0 0
        %367 = vmatprep.subr.bf16.mxu0 0
        %368 = vmatpush1.bf16.msra.mxu0 0
        %369 = vmatprep.subr.bf16.mxu0 0
        %370 = vmatpush1.bf16.msra.mxu0 0
        %371 = vmatprep.subr.bf16.mxu0 0
        %372 = vmatpush1.bf16.msra.mxu0 0
        %373 = vmatprep.subr.bf16.mxu0 0
        %374 = vmatpush1.bf16.msra.mxu0 0
        %375 = vmatprep.subr.bf16.mxu0 0
        %376 = vmatpush1.bf16.msra.mxu0 0
        %377 = vmatprep.subr.bf16.mxu0 0
        %378 = vmatpush1.bf16.msra.mxu0 0
        %379 = vmatprep.subr.bf16.mxu0 0
        %380 = vmatpush1.bf16.msra.mxu0 0
        %381 = vmatprep.subr.bf16.mxu0 0
        %382 = vmatpush1.bf16.msra.mxu0 0
        %383 = vmatprep.subr.bf16.mxu0 0
        %384 = vmatpush1.bf16.msra.mxu0 0
        %385 = vmatprep.subr.bf16.mxu0 0
        %386 = vmatpush1.bf16.msra.mxu0 0
        %387 = vmatprep.mubr.bf16.mxu0 0
        %388 = vmatmul.mubr.bf16.gmra.mrb[0].mxu0 %v297
        %v389 = vpop.f32.mrb[0].mxu0
        %v390 = vadd.f32 %v246, %v389
        %v391 = vpop.f32.mrb[0].mxu0
        %v392 = vadd.f32 %v250, %v391
        %v393 = vpop.f32.mrb[0].mxu0
        %v394 = vadd.f32 %v246, %v393
        %v395 = vpop.f32.mrb[0].mxu0
        %v396 = vadd.f32 %v250, %v395
        %397 = vmatprep.mubr.bf16.mxu0 0
        %398 = vmatmul.mubr.bf16.gmra.mrb[0].mxu0 %v300
        %v399 = vpop.f32.mrb[0].mxu0
        %v400 = vadd.f32 %v246, %v399
        %v401 = vpop.f32.mrb[0].mxu0
        %v402 = vadd.f32 %v250, %v401
        %v403 = vpop.f32.mrb[0].mxu0
        %v404 = vadd.f32 %v246, %v403
        %v405 = vpop.f32.mrb[0].mxu0
        %v406 = vadd.f32 %v250, %v405
        %407 = vdwg.mxu0
        %v408 = vmax.f32 %v392, 0.0
        %v409 = vmax.f32 %v396, 0.0
        %v410 = vmax.f32 %v402, 0.0
        %v411 = vmax.f32 %v406, 0.0
        %v412 = vpack.c.bf16 %v337, %v337
        %v413 = vpack.c.bf16 %v341, %v341
        %v414 = vpack.c.bf16 %v347, %v347
        %v415 = vpack.c.bf16 %v351, %v351
        %v416 = vpack.c.bf16 %v339, %v339
        %v417 = vpack.c.bf16 %v343, %v343
        %v418 = vpack.c.bf16 %v349, %v349
        %v419 = vpack.c.bf16 %v353, %v353
        %v420 = vpack.c.bf16 %v390, %v390
        %v421 = vpack.c.bf16 %v394, %v394
        %v422 = vpack.c.bf16 %v400, %v400
        %v423 = vpack.c.bf16 %v404, %v404
        %424 = vmatprep.subr.bf16.mxu0 0
        %425 = vmatpush1.bf16.xpose.msra.mxu0 %v416
        %426 = vmatprep.subr.bf16.mxu0 0
        %427 = vmatpush1.bf16.xpose.msra.mxu0 0
        %428 = vmatprep.subr.bf16.mxu0 0
        %429 = vmatpush1.bf16.xpose.msra.mxu0 0
        %430 = vmatprep.subr.bf16.mxu0 0
        %431 = vmatpush1.bf16.xpose.msra.mxu0 0
        %432 = vmatprep.subr.bf16.mxu0 0
        %433 = vmatpush1.bf16.xpose.msra.mxu0 0
        %434 = vmatprep.subr.bf16.mxu0 0
        %435 = vmatpush1.bf16.xpose.msra.mxu0 0
        %436 = vmatprep.subr.bf16.mxu0 0
        %437 = vmatpush1.bf16.xpose.msra.mxu0 0
        %438 = vmatprep.subr.bf16.mxu0 0
        %439 = vmatpush1.bf16.xpose.msra.mxu0 0
        %440 = vmatprep.subr.bf16.mxu0 0
        %441 = vmatpush1.bf16.xpose.msra.mxu0 0
        %442 = vmatprep.subr.bf16.mxu0 0
        %443 = vmatpush1.bf16.xpose.msra.mxu0 0
        %444 = vmatprep.subr.bf16.mxu0 0
        %445 = vmatpush1.bf16.xpose.msra.mxu0 0
        %446 = vmatprep.subr.bf16.mxu0 0
        %447 = vmatpush1.bf16.xpose.msra.mxu0 0
        %448 = vmatprep.subr.bf16.mxu0 0
        %449 = vmatpush1.bf16.xpose.msra.mxu0 0
        %450 = vmatprep.subr.bf16.mxu0 0
        %451 = vmatpush1.bf16.xpose.msra.mxu0 0
        %452 = vmatprep.subr.bf16.mxu0 0
        %453 = vmatpush1.bf16.xpose.msra.mxu0 0
        %454 = vmatprep.subr.bf16.mxu0 0
        %455 = vmatpush1.bf16.xpose.msra.mxu0 0
        %456 = vmatprep.mubr.bf16.mxu0 0
        %457 = vmatmul.mubr.bf16.gmra.mrb[0].mxu0 %v412
        %v458 = vpop.f32.mrb[0].mxu0
        %v459 = vadd.f32 0.0, %v458
        %v460 = vpop.f32.mrb[0].mxu0
        %v461 = vpop.f32.mrb[0].mxu0
        %v462 = vpop.f32.mrb[0].mxu0
        %463 = vdwg.mxu0
        %464 = vmatprep.subr.bf16.mxu0 0
        %465 = vmatpush1.bf16.xpose.msra.mxu0 %v417
        %466 = vmatprep.subr.bf16.mxu0 0
        %467 = vmatpush1.bf16.xpose.msra.mxu0 0
        %468 = vmatprep.subr.bf16.mxu0 0
        %469 = vmatpush1.bf16.xpose.msra.mxu0 0
        %470 = vmatprep.subr.bf16.mxu0 0
        %471 = vmatpush1.bf16.xpose.msra.mxu0 0
        %472 = vmatprep.subr.bf16.mxu0 0
        %473 = vmatpush1.bf16.xpose.msra.mxu0 0
        %474 = vmatprep.subr.bf16.mxu0 0
        %475 = vmatpush1.bf16.xpose.msra.mxu0 0
        %476 = vmatprep.subr.bf16.mxu0 0
        %477 = vmatpush1.bf16.xpose.msra.mxu0 0
        %478 = vmatprep.subr.bf16.mxu0 0
        %479 = vmatpush1.bf16.xpose.msra.mxu0 0
        %480 = vmatprep.subr.bf16.mxu0 0
        %481 = vmatpush1.bf16.xpose.msra.mxu0 0
        %482 = vmatprep.subr.bf16.mxu0 0
        %483 = vmatpush1.bf16.xpose.msra.mxu0 0
        %484 = vmatprep.subr.bf16.mxu0 0
        %485 = vmatpush1.bf16.xpose.msra.mxu0 0
        %486 = vmatprep.subr.bf16.mxu0 0
        %487 = vmatpush1.bf16.xpose.msra.mxu0 0
        %488 = vmatprep.subr.bf16.mxu0 0
        %489 = vmatpush1.bf16.xpose.msra.mxu0 0
        %490 = vmatprep.subr.bf16.mxu0 0
        %491 = vmatpush1.bf16.xpose.msra.mxu0 0
        %492 = vmatprep.subr.bf16.mxu0 0
        %493 = vmatpush1.bf16.xpose.msra.mxu0 0
        %494 = vmatprep.subr.bf16.mxu0 0
        %495 = vmatpush1.bf16.xpose.msra.mxu0 0
        %496 = vmatprep.mubr.bf16.mxu0 0
        %497 = vmatmul.mubr.bf16.gmra.mrb[0].mxu0 %v413
        %v498 = vpop.f32.mrb[0].mxu0
        %v499 = vadd.f32 0.0, %v498
        %v500 = vpop.f32.mrb[0].mxu0
        %v501 = vpop.f32.mrb[0].mxu0
        %v502 = vpop.f32.mrb[0].mxu0
        %503 = vdwg.mxu0
        %504 = vmatprep.subr.bf16.mxu0 0
        %505 = vmatpush1.bf16.xpose.msra.mxu0 %v418
        %506 = vmatprep.subr.bf16.mxu0 0
        %507 = vmatpush1.bf16.xpose.msra.mxu0 0
        %508 = vmatprep.subr.bf16.mxu0 0
        %509 = vmatpush1.bf16.xpose.msra.mxu0 0
        %510 = vmatprep.subr.bf16.mxu0 0
        %511 = vmatpush1.bf16.xpose.msra.mxu0 0
        %512 = vmatprep.subr.bf16.mxu0 0
        %513 = vmatpush1.bf16.xpose.msra.mxu0 0
        %514 = vmatprep.subr.bf16.mxu0 0
        %515 = vmatpush1.bf16.xpose.msra.mxu0 0
        %516 = vmatprep.subr.bf16.mxu0 0
        %517 = vmatpush1.bf16.xpose.msra.mxu0 0
        %518 = vmatprep.subr.bf16.mxu0 0
        %519 = vmatpush1.bf16.xpose.msra.mxu0 0
        %520 = vmatprep.subr.bf16.mxu0 0
        %521 = vmatpush1.bf16.xpose.msra.mxu0 0
        %522 = vmatprep.subr.bf16.mxu0 0
        %523 = vmatpush1.bf16.xpose.msra.mxu0 0
        %524 = vmatprep.subr.bf16.mxu0 0
        %525 = vmatpush1.bf16.xpose.msra.mxu0 0
        %526 = vmatprep.subr.bf16.mxu0 0
        %527 = vmatpush1.bf16.xpose.msra.mxu0 0
        %528 = vmatprep.subr.bf16.mxu0 0
        %529 = vmatpush1.bf16.xpose.msra.mxu0 0
        %530 = vmatprep.subr.bf16.mxu0 0
        %531 = vmatpush1.bf16.xpose.msra.mxu0 0
        %532 = vmatprep.subr.bf16.mxu0 0
        %533 = vmatpush1.bf16.xpose.msra.mxu0 0
        %534 = vmatprep.subr.bf16.mxu0 0
        %535 = vmatpush1.bf16.xpose.msra.mxu0 0
        %536 = vmatprep.mubr.bf16.mxu0 0
        %537 = vmatmul.mubr.bf16.gmra.mrb[0].mxu0 %v414
        %v538 = vpop.f32.mrb[0].mxu0
        %v539 = vadd.f32 0.0, %v538
        %v540 = vpop.f32.mrb[0].mxu0
        %v541 = vpop.f32.mrb[0].mxu0
        %v542 = vpop.f32.mrb[0].mxu0
        %543 = vdwg.mxu0
        %544 = vmatprep.subr.bf16.mxu0 0
        %545 = vmatpush1.bf16.xpose.msra.mxu0 %v419
        %546 = vmatprep.subr.bf16.mxu0 0
        %547 = vmatpush1.bf16.xpose.msra.mxu0 0
        %548 = vmatprep.subr.bf16.mxu0 0
        %549 = vmatpush1.bf16.xpose.msra.mxu0 0
        %550 = vmatprep.subr.bf16.mxu0 0
        %551 = vmatpush1.bf16.xpose.msra.mxu0 0
        %552 = vmatprep.subr.bf16.mxu0 0
        %553 = vmatpush1.bf16.xpose.msra.mxu0 0
        %554 = vmatprep.subr.bf16.mxu0 0
        %555 = vmatpush1.bf16.xpose.msra.mxu0 0
        %556 = vmatprep.subr.bf16.mxu0 0
        %557 = vmatpush1.bf16.xpose.msra.mxu0 0
        %558 = vmatprep.subr.bf16.mxu0 0
        %559 = vmatpush1.bf16.xpose.msra.mxu0 0
        %560 = vmatprep.subr.bf16.mxu0 0
        %561 = vmatpush1.bf16.xpose.msra.mxu0 0
        %562 = vmatprep.subr.bf16.mxu0 0
        %563 = vmatpush1.bf16.xpose.msra.mxu0 0
        %564 = vmatprep.subr.bf16.mxu0 0
        %565 = vmatpush1.bf16.xpose.msra.mxu0 0
        %566 = vmatprep.subr.bf16.mxu0 0
        %567 = vmatpush1.bf16.xpose.msra.mxu0 0
        %568 = vmatprep.subr.bf16.mxu0 0
        %569 = vmatpush1.bf16.xpose.msra.mxu0 0
        %570 = vmatprep.subr.bf16.mxu0 0
        %571 = vmatpush1.bf16.xpose.msra.mxu0 0
        %572 = vmatprep.subr.bf16.mxu0 0
        %573 = vmatpush1.bf16.xpose.msra.mxu0 0
        %574 = vmatprep.subr.bf16.mxu0 0
        %575 = vmatpush1.bf16.xpose.msra.mxu0 0
        %576 = vmatprep.mubr.bf16.mxu0 0
        %577 = vmatmul.mubr.bf16.gmra.mrb[0].mxu0 %v415
        %v578 = vpop.f32.mrb[0].mxu0
        %v579 = vadd.f32 0.0, %v578
        %v580 = vpop.f32.mrb[0].mxu0
        %v581 = vpop.f32.mrb[0].mxu0
        %v582 = vpop.f32.mrb[0].mxu0
        %583 = vdwg.mxu0
        %vm584 = vcmask 64512
        %v585 = vsel %vm584, %v459, -inf
        %586 = vmax.xlane.f32.xlu0 %v585
        %v587 = vpop.xlane.xlu0 %586
        %v588 = vsel %vm584, %v499, -inf
        %589 = vmax.xlane.f32.xlu0 %v588
        %v590 = vpop.xlane.xlu0 %589
        %v591 = vsel %vm584, %v539, -inf
        %592 = vmax.xlane.f32.xlu0 %v591
        %v593 = vpop.xlane.xlu0 %592
        %v594 = vsel %vm584, %v579, -inf
        %595 = vmax.xlane.f32.xlu0 %v594
        %v596 = vpop.xlane.xlu0 %595
        %v597 = vsub.f32 %v459, %v587
        %v598 = vsub.f32 %v499, %v590
        %v599 = vsub.f32 %v539, %v593
        %v600 = vsub.f32 %v579, %v596
        %v601 = vmul.f32 %v597, 1.442695
        %v602 = vpow.pop %v601
        %v603 = vmul.f32 %v598, 1.442695
        %v604 = vpow.pop %v603
        %v605 = vmul.f32 %v599, 1.442695
        %v606 = vpow.pop %v605
        %v607 = vmul.f32 %v600, 1.442695
        %v608 = vpow.pop %v607
        %v609 = vsel %vm584, %v602, 0.0
        %610 = vadd.xlane.f32.xlu0 %v609
        %v611 = vpop.xlane.xlu0 %610
        %v612 = vsel %vm584, %v604, 0.0
        %613 = vadd.xlane.f32.xlu0 %v612
        %v614 = vpop.xlane.xlu0 %613
        %v615 = vsel %vm584, %v606, 0.0
        %616 = vadd.xlane.f32.xlu0 %v615
        %v617 = vpop.xlane.xlu0 %616
        %v618 = vsel %vm584, %v608, 0.0
        %619 = vadd.xlane.f32.xlu0 %v618
        %v620 = vpop.xlane.xlu0 %619
        %v621 = vrcp.pop %v611
        %v622 = vmul.f32 %v602, %v621
        %v623 = vrcp.pop %v614
        %v624 = vmul.f32 %v604, %v623
        %v625 = vrcp.pop %v617
        %v626 = vmul.f32 %v606, %v625
        %v627 = vrcp.pop %v620
        %v628 = vmul.f32 %v608, %v627
        %v629 = vpack.c.bf16 %v622, %v622
        %v630 = vpack.c.bf16 %v624, %v624
        %v631 = vpack.c.bf16 %v626, %v626
        %v632 = vpack.c.bf16 %v628, %v628
        %v634 = vsel %vm584, %v629, 0
        %vm636 = vcmask 1043456
        %v638 = vsel %vm636, %v420, 0
        %640 = vmatprep.subr.bf16.mxu0 0
        %641 = vmatpush1.bf16.msra.mxu0 %v638
        %642 = vmatprep.subr.bf16.mxu0 0
        %643 = vmatpush1.bf16.msra.mxu0 0
        %644 = vmatprep.subr.bf16.mxu0 0
        %645 = vmatpush1.bf16.msra.mxu0 0
        %646 = vmatprep.subr.bf16.mxu0 0
        %647 = vmatpush1.bf16.msra.mxu0 0
        %648 = vmatprep.subr.bf16.mxu0 0
        %649 = vmatpush1.bf16.msra.mxu0 0
        %650 = vmatprep.subr.bf16.mxu0 0
        %651 = vmatpush1.bf16.msra.mxu0 0
        %652 = vmatprep.subr.bf16.mxu0 0
        %653 = vmatpush1.bf16.msra.mxu0 0
        %654 = vmatprep.subr.bf16.mxu0 0
        %655 = vmatpush1.bf16.msra.mxu0 0
        %656 = vmatprep.subr.bf16.mxu0 0
        %657 = vmatpush1.bf16.msra.mxu0 0
        %658 = vmatprep.subr.bf16.mxu0 0
        %659 = vmatpush1.bf16.msra.mxu0 0
        %660 = vmatprep.subr.bf16.mxu0 0
        %661 = vmatpush1.bf16.msra.mxu0 0
        %662 = vmatprep.subr.bf16.mxu0 0
        %663 = vmatpush1.bf16.msra.mxu0 0
        %664 = vmatprep.subr.bf16.mxu0 0
        %665 = vmatpush1.bf16.msra.mxu0 0
        %666 = vmatprep.subr.bf16.mxu0 0
        %667 = vmatpush1.bf16.msra.mxu0 0
        %668 = vmatprep.subr.bf16.mxu0 0
        %669 = vmatpush1.bf16.msra.mxu0 0
        %670 = vmatprep.subr.bf16.mxu0 0
        %671 = vmatpush1.bf16.msra.mxu0 0
        %672 = vmatprep.mubr.bf16.mxu0 0
        %673 = vmatmul.mubr.bf16.gmra.mrb[0].mxu0 %v634
        %v674 = vpop.f32.mrb[0].mxu0
        %v675 = vadd.f32 0.0, %v674
        %v676 = vpop.f32.mrb[0].mxu0
        %v677 = vpop.f32.mrb[0].mxu0
        %v678 = vpop.f32.mrb[0].mxu0
        %679 = vdwg.mxu0
        %v681 = vsel %vm584, %v630, 0
        %v684 = vsel %vm636, %v421, 0
        %686 = vmatprep.subr.bf16.mxu0 0
        %687 = vmatpush1.bf16.msra.mxu0 %v684
        %688 = vmatprep.subr.bf16.mxu0 0
        %689 = vmatpush1.bf16.msra.mxu0 0
        %690 = vmatprep.subr.bf16.mxu0 0
        %691 = vmatpush1.bf16.msra.mxu0 0
        %692 = vmatprep.subr.bf16.mxu0 0
        %693 = vmatpush1.bf16.msra.mxu0 0
        %694 = vmatprep.subr.bf16.mxu0 0
        %695 = vmatpush1.bf16.msra.mxu0 0
        %696 = vmatprep.subr.bf16.mxu0 0
        %697 = vmatpush1.bf16.msra.mxu0 0
        %698 = vmatprep.subr.bf16.mxu0 0
        %699 = vmatpush1.bf16.msra.mxu0 0
        %700 = vmatprep.subr.bf16.mxu0 0
        %701 = vmatpush1.bf16.msra.mxu0 0
        %702 = vmatprep.subr.bf16.mxu0 0
        %703 = vmatpush1.bf16.msra.mxu0 0
        %704 = vmatprep.subr.bf16.mxu0 0
        %705 = vmatpush1.bf16.msra.mxu0 0
        %706 = vmatprep.subr.bf16.mxu0 0
        %707 = vmatpush1.bf16.msra.mxu0 0
        %708 = vmatprep.subr.bf16.mxu0 0
        %709 = vmatpush1.bf16.msra.mxu0 0
        %710 = vmatprep.subr.bf16.mxu0 0
        %711 = vmatpush1.bf16.msra.mxu0 0
        %712 = vmatprep.subr.bf16.mxu0 0
        %713 = vmatpush1.bf16.msra.mxu0 0
        %714 = vmatprep.subr.bf16.mxu0 0
        %715 = vmatpush1.bf16.msra.mxu0 0
        %716 = vmatprep.subr.bf16.mxu0 0
        %717 = vmatpush1.bf16.msra.mxu0 0
        %718 = vmatprep.mubr.bf16.mxu0 0
        %719 = vmatmul.mubr.bf16.gmra.mrb[0].mxu0 %v681
        %v720 = vpop.f32.mrb[0].mxu0
        %v721 = vadd.f32 0.0, %v720
        %v722 = vpop.f32.mrb[0].mxu0
        %v723 = vpop.f32.mrb[0].mxu0
        %v724 = vpop.f32.mrb[0].mxu0
        %725 = vdwg.mxu0
        %v727 = vsel %vm584, %v631, 0
        %v730 = vsel %vm636, %v422, 0
        %732 = vmatprep.subr.bf16.mxu0 0
        %733 = vmatpush1.bf16.msra.mxu0 %v730
        %734 = vmatprep.subr.bf16.mxu0 0
        %735 = vmatpush1.bf16.msra.mxu0 0
        %736 = vmatprep.subr.bf16.mxu0 0
        %737 = vmatpush1.bf16.msra.mxu0 0
        %738 = vmatprep.subr.bf16.mxu0 0
        %739 = vmatpush1.bf16.msra.mxu0 0
        %740 = vmatprep.subr.bf16.mxu0 0
        %741 = vmatpush1.bf16.msra.mxu0 0
        %742 = vmatprep.subr.bf16.mxu0 0
        %743 = vmatpush1.bf16.msra.mxu0 0
        %744 = vmatprep.subr.bf16.mxu0 0
        %745 = vmatpush1.bf16.msra.mxu0 0
        %746 = vmatprep.subr.bf16.mxu0 0
        %747 = vmatpush1.bf16.msra.mxu0 0
        %748 = vmatprep.subr.bf16.mxu0 0
        %749 = vmatpush1.bf16.msra.mxu0 0
        %750 = vmatprep.subr.bf16.mxu0 0
        %751 = vmatpush1.bf16.msra.mxu0 0
        %752 = vmatprep.subr.bf16.mxu0 0
        %753 = vmatpush1.bf16.msra.mxu0 0
        %754 = vmatprep.subr.bf16.mxu0 0
        %755 = vmatpush1.bf16.msra.mxu0 0
        %756 = vmatprep.subr.bf16.mxu0 0
        %757 = vmatpush1.bf16.msra.mxu0 0
        %758 = vmatprep.subr.bf16.mxu0 0
        %759 = vmatpush1.bf16.msra.mxu0 0
        %760 = vmatprep.subr.bf16.mxu0 0
        %761 = vmatpush1.bf16.msra.mxu0 0
        %762 = vmatprep.subr.bf16.mxu0 0
        %763 = vmatpush1.bf16.msra.mxu0 0
        %764 = vmatprep.mubr.bf16.mxu0 0
        %765 = vmatmul.mubr.bf16.gmra.mrb[0].mxu0 %v727
        %v766 = vpop.f32.mrb[0].mxu0
        %v767 = vadd.f32 0.0, %v766
        %v768 = vpop.f32.mrb[0].mxu0
        %v769 = vpop.f32.mrb[0].mxu0
        %v770 = vpop.f32.mrb[0].mxu0
        %771 = vdwg.mxu0
        %v773 = vsel %vm584, %v632, 0
        %v776 = vsel %vm636, %v423, 0
        %778 = vmatprep.subr.bf16.mxu0 0
        %779 = vmatpush1.bf16.msra.mxu0 %v776
        %780 = vmatprep.subr.bf16.mxu0 0
        %781 = vmatpush1.bf16.msra.mxu0 0
        %782 = vmatprep.subr.bf16.mxu0 0
        %783 = vmatpush1.bf16.msra.mxu0 0
        %784 = vmatprep.subr.bf16.mxu0 0
        %785 = vmatpush1.bf16.msra.mxu0 0
        %786 = vmatprep.subr.bf16.mxu0 0
        %787 = vmatpush1.bf16.msra.mxu0 0
        %788 = vmatprep.subr.bf16.mxu0 0
        %789 = vmatpush1.bf16.msra.mxu0 0
        %790 = vmatprep.subr.bf16.mxu0 0
        %791 = vmatpush1.bf16.msra.mxu0 0
        %792 = vmatprep.subr.bf16.mxu0 0
        %793 = vmatpush1.bf16.msra.mxu0 0
        %794 = vmatprep.subr.bf16.mxu0 0
        %795 = vmatpush1.bf16.msra.mxu0 0
        %796 = vmatprep.subr.bf16.mxu0 0
        %797 = vmatpush1.bf16.msra.mxu0 0
        %798 = vmatprep.subr.bf16.mxu0 0
        %799 = vmatpush1.bf16.msra.mxu0 0
        %800 = vmatprep.subr.bf16.mxu0 0
        %801 = vmatpush1.bf16.msra.mxu0 0
        %802 = vmatprep.subr.bf16.mxu0 0
        %803 = vmatpush1.bf16.msra.mxu0 0
        %804 = vmatprep.subr.bf16.mxu0 0
        %805 = vmatpush1.bf16.msra.mxu0 0
        %806 = vmatprep.subr.bf16.mxu0 0
        %807 = vmatpush1.bf16.msra.mxu0 0
        %808 = vmatprep.subr.bf16.mxu0 0
        %809 = vmatpush1.bf16.msra.mxu0 0
        %810 = vmatprep.mubr.bf16.mxu0 0
        %811 = vmatmul.mubr.bf16.gmra.mrb[0].mxu0 %v773
        %v812 = vpop.f32.mrb[0].mxu0
        %v813 = vadd.f32 0.0, %v812
        %v814 = vpop.f32.mrb[0].mxu0
        %v815 = vpop.f32.mrb[0].mxu0
        %v816 = vpop.f32.mrb[0].mxu0
        %817 = vdwg.mxu0
        %v818 = vld [vmem:[#allocation5 + $0x40] sm:$0xf]
        %v819 = vld [vmem:[#allocation5 + $0x50] sm:$0xf]
        %v820 = vld [vmem:[#allocation5 + $0x60] sm:$0xf]
        %v821 = vld [vmem:[#allocation5 + $0x70] sm:$0xf]
        %v822 = vld [vmem:[#allocation5 + $0x80] sm:$0xf]
        %v823 = vld [vmem:[#allocation5 + $0x90] sm:$0xf]
        %v824 = vld [vmem:[#allocation5 + $0xa0] sm:$0xf]
        %v825 = vld [vmem:[#allocation5 + $0xb0] sm:$0xf]
        %v826 = vld [vmem:[#allocation5 + $0xc0] sm:$0xf]
        %v827 = vld [vmem:[#allocation5 + $0xd0] sm:$0xf]
        %v828 = vld [vmem:[#allocation5 + $0xe0] sm:$0xf]
        %v829 = vld [vmem:[#allocation5 + $0xf0] sm:$0xf]
        %v830 = vld [vmem:[#allocation5 + $0x100] sm:$0xf]
        %v831 = vld [vmem:[#allocation5 + $0x110] sm:$0xf]
        %v832 = vld [vmem:[#allocation5 + $0x120] sm:$0xf]
        %v833 = vld [vmem:[#allocation5 + $0x130] sm:$0xf]
        %v834 = vld [vmem:[#allocation7 + $0x1] ss:$0 sm:$0xff]
        %v835 = vpack.c.bf16 %v721, %v675
        %v836 = vpack.c.bf16 %v813, %v767
        %v853 = vunpack.c.l.b16 %v818
        %v854 = vunpack.c.l.b16 %v819
        %v855 = vunpack.c.l.b16 %v820
        %v856 = vunpack.c.l.b16 %v821
        %v857 = vunpack.c.l.b16 %v822
        %v858 = vunpack.c.l.b16 %v823
        %v859 = vunpack.c.l.b16 %v824
        %v860 = vunpack.c.l.b16 %v825
        %v861 = vunpack.c.l.b16 %v826
        %v862 = vunpack.c.l.b16 %v827
        %v863 = vunpack.c.l.b16 %v828
        %v864 = vunpack.c.l.b16 %v829
        %v865 = vunpack.c.l.b16 %v830
        %v866 = vunpack.c.l.b16 %v831
        %v867 = vunpack.c.l.b16 %v832
        %v868 = vunpack.c.l.b16 %v833
        %v869 = vpack.c.b16 %v854, %v853
        %v870 = vpack.c.b16 %v856, %v855
        %v871 = vpack.c.b16 %v858, %v857
        %v872 = vpack.c.b16 %v860, %v859
        %v873 = vpack.c.b16 %v862, %v861
        %v874 = vpack.c.b16 %v864, %v863
        %v875 = vpack.c.b16 %v866, %v865
        %v876 = vpack.c.b16 %v868, %v867
        %885 = vmatprep.subr.bf16.mxu0 0
        %886 = vmatpush1.bf16.msra.mxu0 %v869
        %887 = vmatprep.subr.bf16.mxu0 0
        %888 = vmatpush1.bf16.msra.mxu0 %v870
        %889 = vmatprep.subr.bf16.mxu0 0
        %890 = vmatpush1.bf16.msra.mxu0 %v871
        %891 = vmatprep.subr.bf16.mxu0 0
        %892 = vmatpush1.bf16.msra.mxu0 %v872
        %893 = vmatprep.subr.bf16.mxu0 0
        %894 = vmatpush1.bf16.msra.mxu0 %v873
        %895 = vmatprep.subr.bf16.mxu0 0
        %896 = vmatpush1.bf16.msra.mxu0 %v874
        %897 = vmatprep.subr.bf16.mxu0 0
        %898 = vmatpush1.bf16.msra.mxu0 %v875
        %899 = vmatprep.subr.bf16.mxu0 0
        %900 = vmatpush1.bf16.msra.mxu0 %v876
        %901 = vmatprep.subr.bf16.mxu0 0
        %902 = vmatpush1.bf16.msra.mxu0 0
        %903 = vmatprep.subr.bf16.mxu0 0
        %904 = vmatpush1.bf16.msra.mxu0 0
        %905 = vmatprep.subr.bf16.mxu0 0
        %906 = vmatpush1.bf16.msra.mxu0 0
        %907 = vmatprep.subr.bf16.mxu0 0
        %908 = vmatpush1.bf16.msra.mxu0 0
        %909 = vmatprep.subr.bf16.mxu0 0
        %910 = vmatpush1.bf16.msra.mxu0 0
        %911 = vmatprep.subr.bf16.mxu0 0
        %912 = vmatpush1.bf16.msra.mxu0 0
        %913 = vmatprep.subr.bf16.mxu0 0
        %914 = vmatpush1.bf16.msra.mxu0 0
        %915 = vmatprep.subr.bf16.mxu0 0
        %916 = vmatpush1.bf16.msra.mxu0 0
        %917 = vmatprep.mubr.bf16.mxu0 0
        %918 = vmatmul.mubr.bf16.gmra.mrb[0].mxu0 %v835
        %v919 = vpop.f32.mrb[0].mxu0
        %v920 = vadd.f32 %v834, %v919
        %v921 = vpop.f32.mrb[0].mxu0
        %v922 = vpop.f32.mrb[0].mxu0
        %v923 = vadd.f32 %v834, %v922
        %v924 = vpop.f32.mrb[0].mxu0
        %925 = vmatprep.mubr.bf16.mxu0 0
        %926 = vmatmul.mubr.bf16.gmra.mrb[0].mxu0 %v836
        %v927 = vpop.f32.mrb[0].mxu0
        %v928 = vadd.f32 %v834, %v927
        %v929 = vpop.f32.mrb[0].mxu0
        %v930 = vpop.f32.mrb[0].mxu0
        %v931 = vadd.f32 %v834, %v930
        %v932 = vpop.f32.mrb[0].mxu0
        %933 = vdwg.mxu0
        %v934 = vld [vmem:[#allocation5 + $0x140] sm:$0xff]
        %v935 = vld [vmem:[#allocation5 + $0x148] sm:$0xf]
        %v936 = vld [vmem:[#allocation5 + $0x150] sm:$0xff]
        %v937 = vld [vmem:[#allocation5 + $0x158] sm:$0xf]
        %v938 = vld [vmem:[#allocation5 + $0x160] sm:$0xff]
        %v939 = vld [vmem:[#allocation5 + $0x168] sm:$0xf]
        %v940 = vld [vmem:[#allocation5 + $0x170] sm:$0xff]
        %v941 = vld [vmem:[#allocation5 + $0x178] sm:$0xf]
        %v942 = vld [vmem:[#allocation5 + $0x180] sm:$0xff]
        %v943 = vld [vmem:[#allocation5 + $0x188] sm:$0xf]
        %v944 = vld [vmem:[#allocation5 + $0x190] sm:$0xff]
        %v945 = vld [vmem:[#allocation5 + $0x198] sm:$0xf]
        %v946 = vld [vmem:[#allocation5 + $0x1a0] sm:$0xff]
        %v947 = vld [vmem:[#allocation5 + $0x1a8] sm:$0xf]
        %v948 = vld [vmem:[#allocation5 + $0x1b0] sm:$0xff]
        %v949 = vld [vmem:[#allocation5 + $0x1b8] sm:$0xf]
        %v950 = vld [vmem:[#allocation5 + $0x1c0] sm:$0xff]
        %v951 = vld [vmem:[#allocation5 + $0x1c8] sm:$0xf]
        %v952 = vld [vmem:[#allocation5 + $0x1d0] sm:$0xff]
        %v953 = vld [vmem:[#allocation5 + $0x1d8] sm:$0xf]
        %v954 = vld [vmem:[#allocation5 + $0x1e0] sm:$0xff]
        %v955 = vld [vmem:[#allocation5 + $0x1e8] sm:$0xf]
        %v956 = vld [vmem:[#allocation5 + $0x1f0] sm:$0xff]
        %v957 = vld [vmem:[#allocation5 + $0x1f8] sm:$0xf]
        %v958 = vld [vmem:[#allocation5 + $0x200] sm:$0xff]
        %v959 = vld [vmem:[#allocation5 + $0x208] sm:$0xf]
        %v960 = vld [vmem:[#allocation5 + $0x210] sm:$0xff]
        %v961 = vld [vmem:[#allocation5 + $0x218] sm:$0xf]
        %v962 = vld [vmem:[#allocation5 + $0x220] sm:$0xff]
        %v963 = vld [vmem:[#allocation5 + $0x228] sm:$0xf]
        %v964 = vld [vmem:[#allocation5 + $0x230] sm:$0xff]
        %v965 = vld [vmem:[#allocation5 + $0x238] sm:$0xf]
        %s966 = scalar_lea.vmem [#allocation7], 2
        %v967 = vld [vmem:[%s966] ss:$8 sm:$0x7]
        %v968 = vpack.c.bf16 %v923, %v920
        %v969 = vpack.c.bf16 %v931, %v928
        %v971 = vlaneseq
        %v972 = vshrl.u32 %v971, 7
        %v973 = vsub.s32 0, %v972
        %v974 = vrot.slane %v967, %v973
        %v975 = vlaneseq
        %v976 = vshrl.u32 %v975, 7
        %v977 = vsub.s32 1, %v976
        %v978 = vrot.slane %v967, %v977
        %v979 = vlaneseq
        %v980 = vshrl.u32 %v979, 7
        %v981 = vsub.s32 2, %v980
        %v982 = vrot.slane %v967, %v981
        %v1018 = vunpack.c.l.b16 %v934
        %v1019 = vunpack.c.h.b16 %v934
        %v1020 = vunpack.c.l.b16 %v935
        %v1021 = vunpack.c.l.b16 %v936
        %v1022 = vunpack.c.h.b16 %v936
        %v1023 = vunpack.c.l.b16 %v937
        %v1024 = vunpack.c.l.b16 %v938
        %v1025 = vunpack.c.h.b16 %v938
        %v1026 = vunpack.c.l.b16 %v939
        %v1027 = vunpack.c.l.b16 %v940
        %v1028 = vunpack.c.h.b16 %v940
        %v1029 = vunpack.c.l.b16 %v941
        %v1030 = vunpack.c.l.b16 %v942
        %v1031 = vunpack.c.h.b16 %v942
        %v1032 = vunpack.c.l.b16 %v943
        %v1033 = vunpack.c.l.b16 %v944
        %v1034 = vunpack.c.h.b16 %v944
        %v1035 = vunpack.c.l.b16 %v945
        %v1036 = vunpack.c.l.b16 %v946
        %v1037 = vunpack.c.h.b16 %v946
        %v1038 = vunpack.c.l.b16 %v947
        %v1039 = vunpack.c.l.b16 %v948
        %v1040 = vunpack.c.h.b16 %v948
        %v1041 = vunpack.c.l.b16 %v949
        %v1042 = vunpack.c.l.b16 %v950
        %v1043 = vunpack.c.h.b16 %v950
        %v1044 = vunpack.c.l.b16 %v951
        %v1045 = vunpack.c.l.b16 %v952
        %v1046 = vunpack.c.h.b16 %v952
        %v1047 = vunpack.c.l.b16 %v953
        %v1048 = vunpack.c.l.b16 %v954
        %v1049 = vunpack.c.h.b16 %v954
        %v1050 = vunpack.c.l.b16 %v955
        %v1051 = vunpack.c.l.b16 %v956
        %v1052 = vunpack.c.h.b16 %v956
        %v1053 = vunpack.c.l.b16 %v957
        %v1054 = vunpack.c.l.b16 %v958
        %v1055 = vunpack.c.h.b16 %v958
        %v1056 = vunpack.c.l.b16 %v959
        %v1057 = vunpack.c.l.b16 %v960
        %v1058 = vunpack.c.h.b16 %v960
        %v1059 = vunpack.c.l.b16 %v961
        %v1060 = vunpack.c.l.b16 %v962
        %v1061 = vunpack.c.h.b16 %v962
        %v1062 = vunpack.c.l.b16 %v963
        %v1063 = vunpack.c.l.b16 %v964
        %v1064 = vunpack.c.h.b16 %v964
        %v1065 = vunpack.c.l.b16 %v965
        %v1066 = vpack.c.b16 %v1021, %v1018
        %v1067 = vpack.c.b16 %v1022, %v1019
        %v1068 = vpack.c.b16 %v1023, %v1020
        %v1069 = vpack.c.b16 %v1027, %v1024
        %v1070 = vpack.c.b16 %v1028, %v1025
        %v1071 = vpack.c.b16 %v1029, %v1026
        %v1072 = vpack.c.b16 %v1033, %v1030
        %v1073 = vpack.c.b16 %v1034, %v1031
        %v1074 = vpack.c.b16 %v1035, %v1032
        %v1075 = vpack.c.b16 %v1039, %v1036
        %v1076 = vpack.c.b16 %v1040, %v1037
        %v1077 = vpack.c.b16 %v1041, %v1038
        %v1078 = vpack.c.b16 %v1045, %v1042
        %v1079 = vpack.c.b16 %v1046, %v1043
        %v1080 = vpack.c.b16 %v1047, %v1044
        %v1081 = vpack.c.b16 %v1051, %v1048
        %v1082 = vpack.c.b16 %v1052, %v1049
        %v1083 = vpack.c.b16 %v1053, %v1050
        %v1084 = vpack.c.b16 %v1057, %v1054
        %v1085 = vpack.c.b16 %v1058, %v1055
        %v1086 = vpack.c.b16 %v1059, %v1056
        %v1087 = vpack.c.b16 %v1063, %v1060
        %v1088 = vpack.c.b16 %v1064, %v1061
        %v1089 = vpack.c.b16 %v1065, %v1062
        %1114 = vmatprep.subr.bf16.mxu0 %v1067
        %1115 = vmatpush1.bf16.msra.mxu0 %v1066
        %1116 = vmatprep.subr.bf16.mxu0 %v1070
        %1117 = vmatpush1.bf16.msra.mxu0 %v1069
        %1118 = vmatprep.subr.bf16.mxu0 %v1073
        %1119 = vmatpush1.bf16.msra.mxu0 %v1072
        %1120 = vmatprep.subr.bf16.mxu0 %v1076
        %1121 = vmatpush1.bf16.msra.mxu0 %v1075
        %1122 = vmatprep.subr.bf16.mxu0 %v1079
        %1123 = vmatpush1.bf16.msra.mxu0 %v1078
        %1124 = vmatprep.subr.bf16.mxu0 %v1082
        %1125 = vmatpush1.bf16.msra.mxu0 %v1081
        %1126 = vmatprep.subr.bf16.mxu0 %v1085
        %1127 = vmatpush1.bf16.msra.mxu0 %v1084
        %1128 = vmatprep.subr.bf16.mxu0 %v1088
        %1129 = vmatpush1.bf16.msra.mxu0 %v1087
        %1130 = vmatprep.subr.bf16.mxu0 0
        %1131 = vmatpush1.bf16.msra.mxu0 0
        %1132 = vmatprep.subr.bf16.mxu0 0
        %1133 = vmatpush1.bf16.msra.mxu0 0
        %1134 = vmatprep.subr.bf16.mxu0 0
        %1135 = vmatpush1.bf16.msra.mxu0 0
        %1136 = vmatprep.subr.bf16.mxu0 0
        %1137 = vmatpush1.bf16.msra.mxu0 0
        %1138 = vmatprep.subr.bf16.mxu0 0
        %1139 = vmatpush1.bf16.msra.mxu0 0
        %1140 = vmatprep.subr.bf16.mxu0 0
        %1141 = vmatpush1.bf16.msra.mxu0 0
        %1142 = vmatprep.subr.bf16.mxu0 0
        %1143 = vmatpush1.bf16.msra.mxu0 0
        %1144 = vmatprep.subr.bf16.mxu0 0
        %1145 = vmatpush1.bf16.msra.mxu0 0
        %1146 = vmatprep.mubr.bf16.mxu0 0
        %1147 = vmatmul.mubr.bf16.gmra.mrb[0].mxu0 %v968
        %v1148 = vpop.f32.mrb[0].mxu0
        %v1149 = vadd.f32 %v974, %v1148
        %v1150 = vpop.f32.mrb[0].mxu0
        %v1151 = vadd.f32 %v978, %v1150
        %v1152 = vpop.f32.mrb[0].mxu0
        %v1153 = vadd.f32 %v974, %v1152
        %v1154 = vpop.f32.mrb[0].mxu0
        %v1155 = vadd.f32 %v978, %v1154
        %1156 = vmatprep.mubr.bf16.mxu0 0
        %1157 = vmatmul.mubr.bf16.gmra.mrb[0].mxu0 %v969
        %v1158 = vpop.f32.mrb[0].mxu0
        %v1159 = vadd.f32 %v974, %v1158
        %v1160 = vpop.f32.mrb[0].mxu0
        %v1161 = vadd.f32 %v978, %v1160
        %v1162 = vpop.f32.mrb[0].mxu0
        %v1163 = vadd.f32 %v974, %v1162
        %v1164 = vpop.f32.mrb[0].mxu0
        %v1165 = vadd.f32 %v978, %v1164
        %1166 = vdwg.mxu0
        %1167 = vmatprep.subr.bf16.mxu0 0
        %1168 = vmatpush1.bf16.msra.mxu0 %v1068
        %1169 = vmatprep.subr.bf16.mxu0 0
        %1170 = vmatpush1.bf16.msra.mxu0 %v1071
        %1171 = vmatprep.subr.bf16.mxu0 0
        %1172 = vmatpush1.bf16.msra.mxu0 %v1074
        %1173 = vmatprep.subr.bf16.mxu0 0
        %1174 = vmatpush1.bf16.msra.mxu0 %v1077
        %1175 = vmatprep.subr.bf16.mxu0 0
        %1176 = vmatpush1.bf16.msra.mxu0 %v1080
        %1177 = vmatprep.subr.bf16.mxu0 0
        %1178 = vmatpush1.bf16.msra.mxu0 %v1083
        %1179 = vmatprep.subr.bf16.mxu0 0
        %1180 = vmatpush1.bf16.msra.mxu0 %v1086
        %1181 = vmatprep.subr.bf16.mxu0 0
        %1182 = vmatpush1.bf16.msra.mxu0 %v1089
        %1183 = vmatprep.subr.bf16.mxu0 0
        %1184 = vmatpush1.bf16.msra.mxu0 0
        %1185 = vmatprep.subr.bf16.mxu0 0
        %1186 = vmatpush1.bf16.msra.mxu0 0
        %1187 = vmatprep.subr.bf16.mxu0 0
        %1188 = vmatpush1.bf16.msra.mxu0 0
        %1189 = vmatprep.subr.bf16.mxu0 0
        %1190 = vmatpush1.bf16.msra.mxu0 0
        %1191 = vmatprep.subr.bf16.mxu0 0
        %1192 = vmatpush1.bf16.msra.mxu0 0
        %1193 = vmatprep.subr.bf16.mxu0 0
        %1194 = vmatpush1.bf16.msra.mxu0 0
        %1195 = vmatprep.subr.bf16.mxu0 0
        %1196 = vmatpush1.bf16.msra.mxu0 0
        %1197 = vmatprep.subr.bf16.mxu0 0
        %1198 = vmatpush1.bf16.msra.mxu0 0
        %1199 = vmatprep.mubr.bf16.mxu0 0
        %1200 = vmatmul.mubr.bf16.gmra.mrb[0].mxu0 %v968
        %v1201 = vpop.f32.mrb[0].mxu0
        %v1202 = vadd.f32 %v982, %v1201
        %v1203 = vpop.f32.mrb[0].mxu0
        %v1204 = vpop.f32.mrb[0].mxu0
        %v1205 = vadd.f32 %v982, %v1204
        %v1206 = vpop.f32.mrb[0].mxu0
        %1207 = vmatprep.mubr.bf16.mxu0 0
        %1208 = vmatmul.mubr.bf16.gmra.mrb[0].mxu0 %v969
        %v1209 = vpop.f32.mrb[0].mxu0
        %v1210 = vadd.f32 %v982, %v1209
        %v1211 = vpop.f32.mrb[0].mxu0
        %v1212 = vpop.f32.mrb[0].mxu0
        %v1213 = vadd.f32 %v982, %v1212
        %v1214 = vpop.f32.mrb[0].mxu0
        %1215 = vdwg.mxu0
        %v1216 = vpack.c.bf16 %v1149, %v1149
        %v1217 = vpack.c.bf16 %v1153, %v1153
        %v1218 = vpack.c.bf16 %v1159, %v1159
        %v1219 = vpack.c.bf16 %v1163, %v1163
        %v1220 = vpack.c.bf16 %v1151, %v1151
        %v1221 = vpack.c.bf16 %v1155, %v1155
        %v1222 = vpack.c.bf16 %v1161, %v1161
        %v1223 = vpack.c.bf16 %v1165, %v1165
        %v1224 = vpack.c.bf16 %v1202, %v1202
        %v1225 = vpack.c.bf16 %v1205, %v1205
        %v1226 = vpack.c.bf16 %v1210, %v1210
        %v1227 = vpack.c.bf16 %v1213, %v1213
        %1228 = vmatprep.subr.bf16.mxu0 0
        %1229 = vmatpush1.bf16.xpose.msra.mxu0 %v1220
        %1230 = vmatprep.subr.bf16.mxu0 0
        %1231 = vmatpush1.bf16.xpose.msra.mxu0 0
        %1232 = vmatprep.subr.bf16.mxu0 0
        %1233 = vmatpush1.bf16.xpose.msra.mxu0 0
        %1234 = vmatprep.subr.bf16.mxu0 0
        %1235 = vmatpush1.bf16.xpose.msra.mxu0 0
        %1236 = vmatprep.subr.bf16.mxu0 0
        %1237 = vmatpush1.bf16.xpose.msra.mxu0 0
        %1238 = vmatprep.subr.bf16.mxu0 0
        %1239 = vmatpush1.bf16.xpose.msra.mxu0 0
        %1240 = vmatprep.subr.bf16.mxu0 0
        %1241 = vmatpush1.bf16.xpose.msra.mxu0 0
        %1242 = vmatprep.subr.bf16.mxu0 0
        %1243 = vmatpush1.bf16.xpose.msra.mxu0 0
        %1244 = vmatprep.subr.bf16.mxu0 0
        %1245 = vmatpush1.bf16.xpose.msra.mxu0 0
        %1246 = vmatprep.subr.bf16.mxu0 0
        %1247 = vmatpush1.bf16.xpose.msra.mxu0 0
        %1248 = vmatprep.subr.bf16.mxu0 0
        %1249 = vmatpush1.bf16.xpose.msra.mxu0 0
        %1250 = vmatprep.subr.bf16.mxu0 0
        %1251 = vmatpush1.bf16.xpose.msra.mxu0 0
        %1252 = vmatprep.subr.bf16.mxu0 0
        %1253 = vmatpush1.bf16.xpose.msra.mxu0 0
        %1254 = vmatprep.subr.bf16.mxu0 0
        %1255 = vmatpush1.bf16.xpose.msra.mxu0 0
        %1256 = vmatprep.subr.bf16.mxu0 0
        %1257 = vmatpush1.bf16.xpose.msra.mxu0 0
        %1258 = vmatprep.subr.bf16.mxu0 0
        %1259 = vmatpush1.bf16.xpose.msra.mxu0 0
        %1260 = vmatprep.mubr.bf16.mxu0 0
        %1261 = vmatmul.mubr.bf16.gmra.mrb[0].mxu0 %v1216
        %v1262 = vpop.f32.mrb[0].mxu0
        %v1263 = vadd.f32 0.0, %v1262
        %v1264 = vpop.f32.mrb[0].mxu0
        %v1265 = vpop.f32.mrb[0].mxu0
        %v1266 = vpop.f32.mrb[0].mxu0
        %1267 = vdwg.mxu0
        %1268 = vmatprep.subr.bf16.mxu0 0
        %1269 = vmatpush1.bf16.xpose.msra.mxu0 %v1221
        %1270 = vmatprep.subr.bf16.mxu0 0
        %1271 = vmatpush1.bf16.xpose.msra.mxu0 0
        %1272 = vmatprep.subr.bf16.mxu0 0
        %1273 = vmatpush1.bf16.xpose.msra.mxu0 0
        %1274 = vmatprep.subr.bf16.mxu0 0
        %1275 = vmatpush1.bf16.xpose.msra.mxu0 0
        %1276 = vmatprep.subr.bf16.mxu0 0
        %1277 = vmatpush1.bf16.xpose.msra.mxu0 0
        %1278 = vmatprep.subr.bf16.mxu0 0
        %1279 = vmatpush1.bf16.xpose.msra.mxu0 0
        %1280 = vmatprep.subr.bf16.mxu0 0
        %1281 = vmatpush1.bf16.xpose.msra.mxu0 0
        %1282 = vmatprep.subr.bf16.mxu0 0
        %1283 = vmatpush1.bf16.xpose.msra.mxu0 0
        %1284 = vmatprep.subr.bf16.mxu0 0
        %1285 = vmatpush1.bf16.xpose.msra.mxu0 0
        %1286 = vmatprep.subr.bf16.mxu0 0
        %1287 = vmatpush1.bf16.xpose.msra.mxu0 0
        %1288 = vmatprep.subr.bf16.mxu0 0
        %1289 = vmatpush1.bf16.xpose.msra.mxu0 0
        %1290 = vmatprep.subr.bf16.mxu0 0
        %1291 = vmatpush1.bf16.xpose.msra.mxu0 0
        %1292 = vmatprep.subr.bf16.mxu0 0
        %1293 = vmatpush1.bf16.xpose.msra.mxu0 0
        %1294 = vmatprep.subr.bf16.mxu0 0
        %1295 = vmatpush1.bf16.xpose.msra.mxu0 0
        %1296 = vmatprep.subr.bf16.mxu0 0
        %1297 = vmatpush1.bf16.xpose.msra.mxu0 0
        %1298 = vmatprep.subr.bf16.mxu0 0
        %1299 = vmatpush1.bf16.xpose.msra.mxu0 0
        %1300 = vmatprep.mubr.bf16.mxu0 0
        %1301 = vmatmul.mubr.bf16.gmra.mrb[0].mxu0 %v1217
        %v1302 = vpop.f32.mrb[0].mxu0
        %v1303 = vadd.f32 0.0, %v1302
        %v1304 = vpop.f32.mrb[0].mxu0
        %v1305 = vpop.f32.mrb[0].mxu0
        %v1306 = vpop.f32.mrb[0].mxu0
        %1307 = vdwg.mxu0
        %1308 = vmatprep.subr.bf16.mxu0 0
        %1309 = vmatpush1.bf16.xpose.msra.mxu0 %v1222
        %1310 = vmatprep.subr.bf16.mxu0 0
        %1311 = vmatpush1.bf16.xpose.msra.mxu0 0
        %1312 = vmatprep.subr.bf16.mxu0 0
        %1313 = vmatpush1.bf16.xpose.msra.mxu0 0
        %1314 = vmatprep.subr.bf16.mxu0 0
        %1315 = vmatpush1.bf16.xpose.msra.mxu0 0
        %1316 = vmatprep.subr.bf16.mxu0 0
        %1317 = vmatpush1.bf16.xpose.msra.mxu0 0
        %1318 = vmatprep.subr.bf16.mxu0 0
        %1319 = vmatpush1.bf16.xpose.msra.mxu0 0
        %1320 = vmatprep.subr.bf16.mxu0 0
        %1321 = vmatpush1.bf16.xpose.msra.mxu0 0
        %1322 = vmatprep.subr.bf16.mxu0 0
        %1323 = vmatpush1.bf16.xpose.msra.mxu0 0
        %1324 = vmatprep.subr.bf16.mxu0 0
        %1325 = vmatpush1.bf16.xpose.msra.mxu0 0
        %1326 = vmatprep.subr.bf16.mxu0 0
        %1327 = vmatpush1.bf16.xpose.msra.mxu0 0
        %1328 = vmatprep.subr.bf16.mxu0 0
        %1329 = vmatpush1.bf16.xpose.msra.mxu0 0
        %1330 = vmatprep.subr.bf16.mxu0 0
        %1331 = vmatpush1.bf16.xpose.msra.mxu0 0
        %1332 = vmatprep.subr.bf16.mxu0 0
        %1333 = vmatpush1.bf16.xpose.msra.mxu0 0
        %1334 = vmatprep.subr.bf16.mxu0 0
        %1335 = vmatpush1.bf16.xpose.msra.mxu0 0
        %1336 = vmatprep.subr.bf16.mxu0 0
        %1337 = vmatpush1.bf16.xpose.msra.mxu0 0
        %1338 = vmatprep.subr.bf16.mxu0 0
        %1339 = vmatpush1.bf16.xpose.msra.mxu0 0
        %1340 = vmatprep.mubr.bf16.mxu0 0
        %1341 = vmatmul.mubr.bf16.gmra.mrb[0].mxu0 %v1218
        %v1342 = vpop.f32.mrb[0].mxu0
        %v1343 = vadd.f32 0.0, %v1342
        %v1344 = vpop.f32.mrb[0].mxu0
        %v1345 = vpop.f32.mrb[0].mxu0
        %v1346 = vpop.f32.mrb[0].mxu0
        %1347 = vdwg.mxu0
        %1348 = vmatprep.subr.bf16.mxu0 0
        %1349 = vmatpush1.bf16.xpose.msra.mxu0 %v1223
        %1350 = vmatprep.subr.bf16.mxu0 0
        %1351 = vmatpush1.bf16.xpose.msra.mxu0 0
        %1352 = vmatprep.subr.bf16.mxu0 0
        %1353 = vmatpush1.bf16.xpose.msra.mxu0 0
        %1354 = vmatprep.subr.bf16.mxu0 0
        %1355 = vmatpush1.bf16.xpose.msra.mxu0 0
        %1356 = vmatprep.subr.bf16.mxu0 0
        %1357 = vmatpush1.bf16.xpose.msra.mxu0 0
        %1358 = vmatprep.subr.bf16.mxu0 0
        %1359 = vmatpush1.bf16.xpose.msra.mxu0 0
        %1360 = vmatprep.subr.bf16.mxu0 0
        %1361 = vmatpush1.bf16.xpose.msra.mxu0 0
        %1362 = vmatprep.subr.bf16.mxu0 0
        %1363 = vmatpush1.bf16.xpose.msra.mxu0 0
        %1364 = vmatprep.subr.bf16.mxu0 0
        %1365 = vmatpush1.bf16.xpose.msra.mxu0 0
        %1366 = vmatprep.subr.bf16.mxu0 0
        %1367 = vmatpush1.bf16.xpose.msra.mxu0 0
        %1368 = vmatprep.subr.bf16.mxu0 0
        %1369 = vmatpush1.bf16.xpose.msra.mxu0 0
        %1370 = vmatprep.subr.bf16.mxu0 0
        %1371 = vmatpush1.bf16.xpose.msra.mxu0 0
        %1372 = vmatprep.subr.bf16.mxu0 0
        %1373 = vmatpush1.bf16.xpose.msra.mxu0 0
        %1374 = vmatprep.subr.bf16.mxu0 0
        %1375 = vmatpush1.bf16.xpose.msra.mxu0 0
        %1376 = vmatprep.subr.bf16.mxu0 0
        %1377 = vmatpush1.bf16.xpose.msra.mxu0 0
        %1378 = vmatprep.subr.bf16.mxu0 0
        %1379 = vmatpush1.bf16.xpose.msra.mxu0 0
        %1380 = vmatprep.mubr.bf16.mxu0 0
        %1381 = vmatmul.mubr.bf16.gmra.mrb[0].mxu0 %v1219
        %v1382 = vpop.f32.mrb[0].mxu0
        %v1383 = vadd.f32 0.0, %v1382
        %v1384 = vpop.f32.mrb[0].mxu0
        %v1385 = vpop.f32.mrb[0].mxu0
        %v1386 = vpop.f32.mrb[0].mxu0
        %1387 = vdwg.mxu0
        %v1388 = vsel %vm584, %v1263, -inf
        %1389 = vmax.xlane.f32.xlu0 %v1388
        %v1390 = vpop.xlane.xlu0 %1389
        %v1391 = vsel %vm584, %v1303, -inf
        %1392 = vmax.xlane.f32.xlu0 %v1391
        %v1393 = vpop.xlane.xlu0 %1392
        %v1394 = vsel %vm584, %v1343, -inf
        %1395 = vmax.xlane.f32.xlu0 %v1394
        %v1396 = vpop.xlane.xlu0 %1395
        %v1397 = vsel %vm584, %v1383, -inf
        %1398 = vmax.xlane.f32.xlu0 %v1397
        %v1399 = vpop.xlane.xlu0 %1398
        %v1400 = vsub.f32 %v1263, %v1390
        %v1401 = vsub.f32 %v1303, %v1393
        %v1402 = vsub.f32 %v1343, %v1396
        %v1403 = vsub.f32 %v1383, %v1399
        %v1404 = vmul.f32 %v1400, 1.442695
        %v1405 = vpow.pop %v1404
        %v1406 = vmul.f32 %v1401, 1.442695
        %v1407 = vpow.pop %v1406
        %v1408 = vmul.f32 %v1402, 1.442695
        %v1409 = vpow.pop %v1408
        %v1410 = vmul.f32 %v1403, 1.442695
        %v1411 = vpow.pop %v1410
        %v1412 = vsel %vm584, %v1405, 0.0
        %1413 = vadd.xlane.f32.xlu0 %v1412
        %v1414 = vpop.xlane.xlu0 %1413
        %v1415 = vsel %vm584, %v1407, 0.0
        %1416 = vadd.xlane.f32.xlu0 %v1415
        %v1417 = vpop.xlane.xlu0 %1416
        %v1418 = vsel %vm584, %v1409, 0.0
        %1419 = vadd.xlane.f32.xlu0 %v1418
        %v1420 = vpop.xlane.xlu0 %1419
        %v1421 = vsel %vm584, %v1411, 0.0
        %1422 = vadd.xlane.f32.xlu0 %v1421
        %v1423 = vpop.xlane.xlu0 %1422
        %v1424 = vrcp.pop %v1414
        %v1425 = vmul.f32 %v1405, %v1424
        %v1426 = vrcp.pop %v1417
        %v1427 = vmul.f32 %v1407, %v1426
        %v1428 = vrcp.pop %v1420
        %v1429 = vmul.f32 %v1409, %v1428
        %v1430 = vrcp.pop %v1423
        %v1431 = vmul.f32 %v1411, %v1430
        %v1432 = vpack.c.bf16 %v1425, %v1425
        %v1433 = vpack.c.bf16 %v1427, %v1427
        %v1434 = vpack.c.bf16 %v1429, %v1429
        %v1435 = vpack.c.bf16 %v1431, %v1431
        %v1437 = vsel %vm584, %v1432, 0
        %v1440 = vsel %vm636, %v1224, 0
        %1442 = vmatprep.subr.bf16.mxu0 0
        %1443 = vmatpush1.bf16.msra.mxu0 %v1440
        %1444 = vmatprep.subr.bf16.mxu0 0
        %1445 = vmatpush1.bf16.msra.mxu0 0
        %1446 = vmatprep.subr.bf16.mxu0 0
        %1447 = vmatpush1.bf16.msra.mxu0 0
        %1448 = vmatprep.subr.bf16.mxu0 0
        %1449 = vmatpush1.bf16.msra.mxu0 0
        %1450 = vmatprep.subr.bf16.mxu0 0
        %1451 = vmatpush1.bf16.msra.mxu0 0
        %1452 = vmatprep.subr.bf16.mxu0 0
        %1453 = vmatpush1.bf16.msra.mxu0 0
        %1454 = vmatprep.subr.bf16.mxu0 0
        %1455 = vmatpush1.bf16.msra.mxu0 0
        %1456 = vmatprep.subr.bf16.mxu0 0
        %1457 = vmatpush1.bf16.msra.mxu0 0
        %1458 = vmatprep.subr.bf16.mxu0 0
        %1459 = vmatpush1.bf16.msra.mxu0 0
        %1460 = vmatprep.subr.bf16.mxu0 0
        %1461 = vmatpush1.bf16.msra.mxu0 0
        %1462 = vmatprep.subr.bf16.mxu0 0
        %1463 = vmatpush1.bf16.msra.mxu0 0
        %1464 = vmatprep.subr.bf16.mxu0 0
        %1465 = vmatpush1.bf16.msra.mxu0 0
        %1466 = vmatprep.subr.bf16.mxu0 0
        %1467 = vmatpush1.bf16.msra.mxu0 0
        %1468 = vmatprep.subr.bf16.mxu0 0
        %1469 = vmatpush1.bf16.msra.mxu0 0
        %1470 = vmatprep.subr.bf16.mxu0 0
        %1471 = vmatpush1.bf16.msra.mxu0 0
        %1472 = vmatprep.subr.bf16.mxu0 0
        %1473 = vmatpush1.bf16.msra.mxu0 0
        %1474 = vmatprep.mubr.bf16.mxu0 0
        %1475 = vmatmul.mubr.bf16.gmra.mrb[0].mxu0 %v1437
        %v1476 = vpop.f32.mrb[0].mxu0
        %v1477 = vadd.f32 0.0, %v1476
        %v1478 = vpop.f32.mrb[0].mxu0
        %v1479 = vpop.f32.mrb[0].mxu0
        %v1480 = vpop.f32.mrb[0].mxu0
        %1481 = vdwg.mxu0
        %v1483 = vsel %vm584, %v1433, 0
        %v1486 = vsel %vm636, %v1225, 0
        %1488 = vmatprep.subr.bf16.mxu0 0
        %1489 = vmatpush1.bf16.msra.mxu0 %v1486
        %1490 = vmatprep.subr.bf16.mxu0 0
        %1491 = vmatpush1.bf16.msra.mxu0 0
        %1492 = vmatprep.subr.bf16.mxu0 0
        %1493 = vmatpush1.bf16.msra.mxu0 0
        %1494 = vmatprep.subr.bf16.mxu0 0
        %1495 = vmatpush1.bf16.msra.mxu0 0
        %1496 = vmatprep.subr.bf16.mxu0 0
        %1497 = vmatpush1.bf16.msra.mxu0 0
        %1498 = vmatprep.subr.bf16.mxu0 0
        %1499 = vmatpush1.bf16.msra.mxu0 0
        %1500 = vmatprep.subr.bf16.mxu0 0
        %1501 = vmatpush1.bf16.msra.mxu0 0
        %1502 = vmatprep.subr.bf16.mxu0 0
        %1503 = vmatpush1.bf16.msra.mxu0 0
        %1504 = vmatprep.subr.bf16.mxu0 0
        %1505 = vmatpush1.bf16.msra.mxu0 0
        %1506 = vmatprep.subr.bf16.mxu0 0
        %1507 = vmatpush1.bf16.msra.mxu0 0
        %1508 = vmatprep.subr.bf16.mxu0 0
        %1509 = vmatpush1.bf16.msra.mxu0 0
        %1510 = vmatprep.subr.bf16.mxu0 0
        %1511 = vmatpush1.bf16.msra.mxu0 0
        %1512 = vmatprep.subr.bf16.mxu0 0
        %1513 = vmatpush1.bf16.msra.mxu0 0
        %1514 = vmatprep.subr.bf16.mxu0 0
        %1515 = vmatpush1.bf16.msra.mxu0 0
        %1516 = vmatprep.subr.bf16.mxu0 0
        %1517 = vmatpush1.bf16.msra.mxu0 0
        %1518 = vmatprep.subr.bf16.mxu0 0
        %1519 = vmatpush1.bf16.msra.mxu0 0
        %1520 = vmatprep.mubr.bf16.mxu0 0
        %1521 = vmatmul.mubr.bf16.gmra.mrb[0].mxu0 %v1483
        %v1522 = vpop.f32.mrb[0].mxu0
        %v1523 = vadd.f32 0.0, %v1522
        %v1524 = vpop.f32.mrb[0].mxu0
        %v1525 = vpop.f32.mrb[0].mxu0
        %v1526 = vpop.f32.mrb[0].mxu0
        %1527 = vdwg.mxu0
        %v1529 = vsel %vm584, %v1434, 0
        %v1532 = vsel %vm636, %v1226, 0
        %1534 = vmatprep.subr.bf16.mxu0 0
        %1535 = vmatpush1.bf16.msra.mxu0 %v1532
        %1536 = vmatprep.subr.bf16.mxu0 0
        %1537 = vmatpush1.bf16.msra.mxu0 0
        %1538 = vmatprep.subr.bf16.mxu0 0
        %1539 = vmatpush1.bf16.msra.mxu0 0
        %1540 = vmatprep.subr.bf16.mxu0 0
        %1541 = vmatpush1.bf16.msra.mxu0 0
        %1542 = vmatprep.subr.bf16.mxu0 0
        %1543 = vmatpush1.bf16.msra.mxu0 0
        %1544 = vmatprep.subr.bf16.mxu0 0
        %1545 = vmatpush1.bf16.msra.mxu0 0
        %1546 = vmatprep.subr.bf16.mxu0 0
        %1547 = vmatpush1.bf16.msra.mxu0 0
        %1548 = vmatprep.subr.bf16.mxu0 0
        %1549 = vmatpush1.bf16.msra.mxu0 0
        %1550 = vmatprep.subr.bf16.mxu0 0
        %1551 = vmatpush1.bf16.msra.mxu0 0
        %1552 = vmatprep.subr.bf16.mxu0 0
        %1553 = vmatpush1.bf16.msra.mxu0 0
        %1554 = vmatprep.subr.bf16.mxu0 0
        %1555 = vmatpush1.bf16.msra.mxu0 0
        %1556 = vmatprep.subr.bf16.mxu0 0
        %1557 = vmatpush1.bf16.msra.mxu0 0
        %1558 = vmatprep.subr.bf16.mxu0 0
        %1559 = vmatpush1.bf16.msra.mxu0 0
        %1560 = vmatprep.subr.bf16.mxu0 0
        %1561 = vmatpush1.bf16.msra.mxu0 0
        %1562 = vmatprep.subr.bf16.mxu0 0
        %1563 = vmatpush1.bf16.msra.mxu0 0
        %1564 = vmatprep.subr.bf16.mxu0 0
        %1565 = vmatpush1.bf16.msra.mxu0 0
        %1566 = vmatprep.mubr.bf16.mxu0 0
        %1567 = vmatmul.mubr.bf16.gmra.mrb[0].mxu0 %v1529
        %v1568 = vpop.f32.mrb[0].mxu0
        %v1569 = vadd.f32 0.0, %v1568
        %v1570 = vpop.f32.mrb[0].mxu0
        %v1571 = vpop.f32.mrb[0].mxu0
        %v1572 = vpop.f32.mrb[0].mxu0
        %1573 = vdwg.mxu0
        %v1575 = vsel %vm584, %v1435, 0
        %v1578 = vsel %vm636, %v1227, 0
        %1580 = vmatprep.subr.bf16.mxu0 0
        %1581 = vmatpush1.bf16.msra.mxu0 %v1578
        %1582 = vmatprep.subr.bf16.mxu0 0
        %1583 = vmatpush1.bf16.msra.mxu0 0
        %1584 = vmatprep.subr.bf16.mxu0 0
        %1585 = vmatpush1.bf16.msra.mxu0 0
        %1586 = vmatprep.subr.bf16.mxu0 0
        %1587 = vmatpush1.bf16.msra.mxu0 0
        %1588 = vmatprep.subr.bf16.mxu0 0
        %1589 = vmatpush1.bf16.msra.mxu0 0
        %1590 = vmatprep.subr.bf16.mxu0 0
        %1591 = vmatpush1.bf16.msra.mxu0 0
        %1592 = vmatprep.subr.bf16.mxu0 0
        %1593 = vmatpush1.bf16.msra.mxu0 0
        %1594 = vmatprep.subr.bf16.mxu0 0
        %1595 = vmatpush1.bf16.msra.mxu0 0
        %1596 = vmatprep.subr.bf16.mxu0 0
        %1597 = vmatpush1.bf16.msra.mxu0 0
        %1598 = vmatprep.subr.bf16.mxu0 0
        %1599 = vmatpush1.bf16.msra.mxu0 0
        %1600 = vmatprep.subr.bf16.mxu0 0
        %1601 = vmatpush1.bf16.msra.mxu0 0
        %1602 = vmatprep.subr.bf16.mxu0 0
        %1603 = vmatpush1.bf16.msra.mxu0 0
        %1604 = vmatprep.subr.bf16.mxu0 0
        %1605 = vmatpush1.bf16.msra.mxu0 0
        %1606 = vmatprep.subr.bf16.mxu0 0
        %1607 = vmatpush1.bf16.msra.mxu0 0
        %1608 = vmatprep.subr.bf16.mxu0 0
        %1609 = vmatpush1.bf16.msra.mxu0 0
        %1610 = vmatprep.subr.bf16.mxu0 0
        %1611 = vmatpush1.bf16.msra.mxu0 0
        %1612 = vmatprep.mubr.bf16.mxu0 0
        %1613 = vmatmul.mubr.bf16.gmra.mrb[0].mxu0 %v1575
        %v1614 = vpop.f32.mrb[0].mxu0
        %v1615 = vadd.f32 0.0, %v1614
        %v1616 = vpop.f32.mrb[0].mxu0
        %v1617 = vpop.f32.mrb[0].mxu0
        %v1618 = vpop.f32.mrb[0].mxu0
        %1619 = vdwg.mxu0
        %v1620 = vmax.f32 %v1477, 0.0
        %v1621 = vmax.f32 %v1523, 0.0
        %v1622 = vmax.f32 %v1569, 0.0
        %v1623 = vmax.f32 %v1615, 0.0
        %v1624 = vld [vmem:[#allocation5 + $0x240] sm:$0xf]
        %v1625 = vld [vmem:[#allocation5 + $0x250] sm:$0xf]
        %v1626 = vld [vmem:[#allocation5 + $0x260] sm:$0xf]
        %v1627 = vld [vmem:[#allocation5 + $0x270] sm:$0xf]
        %v1628 = vld [vmem:[#allocation5 + $0x280] sm:$0xf]
        %v1629 = vld [vmem:[#allocation5 + $0x290] sm:$0xf]
        %v1630 = vld [vmem:[#allocation5 + $0x2a0] sm:$0xf]
        %v1631 = vld [vmem:[#allocation5 + $0x2b0] sm:$0xf]
        %v1632 = vld [vmem:[#allocation5 + $0x2c0] sm:$0xf]
        %v1633 = vld [vmem:[#allocation5 + $0x2d0] sm:$0xf]
        %v1634 = vld [vmem:[#allocation5 + $0x2e0] sm:$0xf]
        %v1635 = vld [vmem:[#allocation5 + $0x2f0] sm:$0xf]
        %v1636 = vld [vmem:[#allocation5 + $0x300] sm:$0xf]
        %v1637 = vld [vmem:[#allocation5 + $0x310] sm:$0xf]
        %v1638 = vld [vmem:[#allocation5 + $0x320] sm:$0xf]
        %v1639 = vld [vmem:[#allocation5 + $0x330] sm:$0xf]
        %v1640 = vld [vmem:[#allocation7 + $0x3] ss:$0 sm:$0xff]
        %v1641 = vpack.c.bf16 %v1621, %v1620
        %v1642 = vpack.c.bf16 %v1623, %v1622
        %v1659 = vunpack.c.l.b16 %v1624
        %v1660 = vunpack.c.l.b16 %v1625
        %v1661 = vunpack.c.l.b16 %v1626
        %v1662 = vunpack.c.l.b16 %v1627
        %v1663 = vunpack.c.l.b16 %v1628
        %v1664 = vunpack.c.l.b16 %v1629
        %v1665 = vunpack.c.l.b16 %v1630
        %v1666 = vunpack.c.l.b16 %v1631
        %v1667 = vunpack.c.l.b16 %v1632
        %v1668 = vunpack.c.l.b16 %v1633
        %v1669 = vunpack.c.l.b16 %v1634
        %v1670 = vunpack.c.l.b16 %v1635
        %v1671 = vunpack.c.l.b16 %v1636
        %v1672 = vunpack.c.l.b16 %v1637
        %v1673 = vunpack.c.l.b16 %v1638
        %v1674 = vunpack.c.l.b16 %v1639
        %v1675 = vpack.c.b16 %v1660, %v1659
        %v1676 = vpack.c.b16 %v1662, %v1661
        %v1677 = vpack.c.b16 %v1664, %v1663
        %v1678 = vpack.c.b16 %v1666, %v1665
        %v1679 = vpack.c.b16 %v1668, %v1667
        %v1680 = vpack.c.b16 %v1670, %v1669
        %v1681 = vpack.c.b16 %v1672, %v1671
        %v1682 = vpack.c.b16 %v1674, %v1673
        %1691 = vmatprep.subr.bf16.mxu0 0
        %1692 = vmatpush1.bf16.msra.mxu0 %v1675
        %1693 = vmatprep.subr.bf16.mxu0 0
        %1694 = vmatpush1.bf16.msra.mxu0 %v1676
        %1695 = vmatprep.subr.bf16.mxu0 0
        %1696 = vmatpush1.bf16.msra.mxu0 %v1677
        %1697 = vmatprep.subr.bf16.mxu0 0
        %1698 = vmatpush1.bf16.msra.mxu0 %v1678
        %1699 = vmatprep.subr.bf16.mxu0 0
        %1700 = vmatpush1.bf16.msra.mxu0 %v1679
        %1701 = vmatprep.subr.bf16.mxu0 0
        %1702 = vmatpush1.bf16.msra.mxu0 %v1680
        %1703 = vmatprep.subr.bf16.mxu0 0
        %1704 = vmatpush1.bf16.msra.mxu0 %v1681
        %1705 = vmatprep.subr.bf16.mxu0 0
        %1706 = vmatpush1.bf16.msra.mxu0 %v1682
        %1707 = vmatprep.subr.bf16.mxu0 0
        %1708 = vmatpush1.bf16.msra.mxu0 0
        %1709 = vmatprep.subr.bf16.mxu0 0
        %1710 = vmatpush1.bf16.msra.mxu0 0
        %1711 = vmatprep.subr.bf16.mxu0 0
        %1712 = vmatpush1.bf16.msra.mxu0 0
        %1713 = vmatprep.subr.bf16.mxu0 0
        %1714 = vmatpush1.bf16.msra.mxu0 0
        %1715 = vmatprep.subr.bf16.mxu0 0
        %1716 = vmatpush1.bf16.msra.mxu0 0
        %1717 = vmatprep.subr.bf16.mxu0 0
        %1718 = vmatpush1.bf16.msra.mxu0 0
        %1719 = vmatprep.subr.bf16.mxu0 0
        %1720 = vmatpush1.bf16.msra.mxu0 0
        %1721 = vmatprep.subr.bf16.mxu0 0
        %1722 = vmatpush1.bf16.msra.mxu0 0
        %1723 = vmatprep.mubr.bf16.mxu0 0
        %1724 = vmatmul.mubr.bf16.gmra.mrb[0].mxu0 %v1641
        %v1725 = vpop.f32.mrb[0].mxu0
        %v1726 = vadd.f32 %v1640, %v1725
        %v1727 = vpop.f32.mrb[0].mxu0
        %v1728 = vpop.f32.mrb[0].mxu0
        %v1729 = vadd.f32 %v1640, %v1728
        %v1730 = vpop.f32.mrb[0].mxu0
        %1731 = vmatprep.mubr.bf16.mxu0 0
        %1732 = vmatmul.mubr.bf16.gmra.mrb[0].mxu0 %v1642
        %v1733 = vpop.f32.mrb[0].mxu0
        %v1734 = vadd.f32 %v1640, %v1733
        %v1735 = vpop.f32.mrb[0].mxu0
        %v1736 = vpop.f32.mrb[0].mxu0
        %v1737 = vadd.f32 %v1640, %v1736
        %v1738 = vpop.f32.mrb[0].mxu0
        %1739 = vdwg.mxu0
        %v1740 = vmax.f32 %v1726, 0.0
        %v1741 = vmax.f32 %v1729, 0.0
        %v1742 = vmax.f32 %v1734, 0.0
        %v1743 = vmax.f32 %v1737, 0.0
        %v1744 = vld [vmem:[#allocation5 + $0x340] sm:$0xf]
        %v1745 = vld [vmem:[#allocation5 + $0x350] sm:$0xf]
        %v1746 = vld [vmem:[#allocation5 + $0x360] sm:$0xf]
        %v1747 = vld [vmem:[#allocation5 + $0x370] sm:$0xf]
        %v1748 = vld [vmem:[#allocation5 + $0x380] sm:$0xf]
        %v1749 = vld [vmem:[#allocation5 + $0x390] sm:$0xf]
        %v1750 = vld [vmem:[#allocation5 + $0x3a0] sm:$0xf]
        %v1751 = vld [vmem:[#allocation5 + $0x3b0] sm:$0xf]
        %v1752 = vld [vmem:[#allocation5 + $0x3c0] sm:$0xf]
        %v1753 = vld [vmem:[#allocation5 + $0x3d0] sm:$0xf]
        %v1754 = vld [vmem:[#allocation5 + $0x3e0] sm:$0xf]
        %v1755 = vld [vmem:[#allocation5 + $0x3f0] sm:$0xf]
        %v1756 = vld [vmem:[#allocation5 + $0x400] sm:$0xf]
        %v1757 = vld [vmem:[#allocation5 + $0x410] sm:$0xf]
        %v1758 = vld [vmem:[#allocation5 + $0x420] sm:$0xf]
        %v1759 = vld [vmem:[#allocation5 + $0x430] sm:$0xf]
        %v1760 = vld [vmem:[#allocation7 + $0x4] ss:$0 sm:$0xff]
        %v1761 = vpack.c.bf16 %v409, %v408
        %v1762 = vpack.c.bf16 %v411, %v410
        %v1779 = vunpack.c.l.b16 %v1744
        %v1780 = vunpack.c.l.b16 %v1745
        %v1781 = vunpack.c.l.b16 %v1746
        %v1782 = vunpack.c.l.b16 %v1747
        %v1783 = vunpack.c.l.b16 %v1748
        %v1784 = vunpack.c.l.b16 %v1749
        %v1785 = vunpack.c.l.b16 %v1750
        %v1786 = vunpack.c.l.b16 %v1751
        %v1787 = vunpack.c.l.b16 %v1752
        %v1788 = vunpack.c.l.b16 %v1753
        %v1789 = vunpack.c.l.b16 %v1754
        %v1790 = vunpack.c.l.b16 %v1755
        %v1791 = vunpack.c.l.b16 %v1756
        %v1792 = vunpack.c.l.b16 %v1757
        %v1793 = vunpack.c.l.b16 %v1758
        %v1794 = vunpack.c.l.b16 %v1759
        %v1795 = vpack.c.b16 %v1780, %v1779
        %v1796 = vpack.c.b16 %v1782, %v1781
        %v1797 = vpack.c.b16 %v1784, %v1783
        %v1798 = vpack.c.b16 %v1786, %v1785
        %v1799 = vpack.c.b16 %v1788, %v1787
        %v1800 = vpack.c.b16 %v1790, %v1789
        %v1801 = vpack.c.b16 %v1792, %v1791
        %v1802 = vpack.c.b16 %v1794, %v1793
        %1811 = vmatprep.subr.bf16.mxu0 0
        %1812 = vmatpush1.bf16.msra.mxu0 %v1795
        %1813 = vmatprep.subr.bf16.mxu0 0
        %1814 = vmatpush1.bf16.msra.mxu0 %v1796
        %1815 = vmatprep.subr.bf16.mxu0 0
        %1816 = vmatpush1.bf16.msra.mxu0 %v1797
        %1817 = vmatprep.subr.bf16.mxu0 0
        %1818 = vmatpush1.bf16.msra.mxu0 %v1798
        %1819 = vmatprep.subr.bf16.mxu0 0
        %1820 = vmatpush1.bf16.msra.mxu0 %v1799
        %1821 = vmatprep.subr.bf16.mxu0 0
        %1822 = vmatpush1.bf16.msra.mxu0 %v1800
        %1823 = vmatprep.subr.bf16.mxu0 0
        %1824 = vmatpush1.bf16.msra.mxu0 %v1801
        %1825 = vmatprep.subr.bf16.mxu0 0
        %1826 = vmatpush1.bf16.msra.mxu0 %v1802
        %1827 = vmatprep.subr.bf16.mxu0 0
        %1828 = vmatpush1.bf16.msra.mxu0 0
        %1829 = vmatprep.subr.bf16.mxu0 0
        %1830 = vmatpush1.bf16.msra.mxu0 0
        %1831 = vmatprep.subr.bf16.mxu0 0
        %1832 = vmatpush1.bf16.msra.mxu0 0
        %1833 = vmatprep.subr.bf16.mxu0 0
        %1834 = vmatpush1.bf16.msra.mxu0 0
        %1835 = vmatprep.subr.bf16.mxu0 0
        %1836 = vmatpush1.bf16.msra.mxu0 0
        %1837 = vmatprep.subr.bf16.mxu0 0
        %1838 = vmatpush1.bf16.msra.mxu0 0
        %1839 = vmatprep.subr.bf16.mxu0 0
        %1840 = vmatpush1.bf16.msra.mxu0 0
        %1841 = vmatprep.subr.bf16.mxu0 0
        %1842 = vmatpush1.bf16.msra.mxu0 0
        %1843 = vmatprep.mubr.bf16.mxu0 0
        %1844 = vmatmul.mubr.bf16.gmra.mrb[0].mxu0 %v1761
        %v1845 = vpop.f32.mrb[0].mxu0
        %v1846 = vadd.f32 %v1760, %v1845
        %v1847 = vpop.f32.mrb[0].mxu0
        %v1848 = vpop.f32.mrb[0].mxu0
        %v1849 = vadd.f32 %v1760, %v1848
        %v1850 = vpop.f32.mrb[0].mxu0
        %1851 = vmatprep.mubr.bf16.mxu0 0
        %1852 = vmatmul.mubr.bf16.gmra.mrb[0].mxu0 %v1762
        %v1853 = vpop.f32.mrb[0].mxu0
        %v1854 = vadd.f32 %v1760, %v1853
        %v1855 = vpop.f32.mrb[0].mxu0
        %v1856 = vpop.f32.mrb[0].mxu0
        %v1857 = vadd.f32 %v1760, %v1856
        %v1858 = vpop.f32.mrb[0].mxu0
        %1859 = vdwg.mxu0
        %v1860 = vmax.f32 %v1846, 0.0
        %v1861 = vmax.f32 %v1849, 0.0
        %v1862 = vmax.f32 %v1854, 0.0
        %v1863 = vmax.f32 %v1857, 0.0
        %v1864 = vpack.c.bf16 %v1741, %v1740
        %v1865 = vpack.c.bf16 %v1743, %v1742
        %v1866 = vld [vmem:[#allocation5 + $0x440] sm:$0xf]
        %v1867 = vld [vmem:[#allocation5 + $0x450] sm:$0xf]
        %v1868 = vld [vmem:[#allocation5 + $0x460] sm:$0xf]
        %v1869 = vld [vmem:[#allocation5 + $0x470] sm:$0xf]
        %v1870 = vld [vmem:[#allocation5 + $0x480] sm:$0xf]
        %v1871 = vld [vmem:[#allocation5 + $0x490] sm:$0xf]
        %v1872 = vld [vmem:[#allocation5 + $0x4a0] sm:$0xf]
        %v1873 = vld [vmem:[#allocation5 + $0x4b0] sm:$0xf]
        %v1874 = vld [vmem:[#allocation5 + $0x4c0] sm:$0xf]
        %v1875 = vld [vmem:[#allocation5 + $0x4d0] sm:$0xf]
        %v1876 = vld [vmem:[#allocation5 + $0x4e0] sm:$0xf]
        %v1877 = vld [vmem:[#allocation5 + $0x4f0] sm:$0xf]
        %v1878 = vld [vmem:[#allocation5 + $0x500] sm:$0xf]
        %v1879 = vld [vmem:[#allocation5 + $0x510] sm:$0xf]
        %v1880 = vld [vmem:[#allocation5 + $0x520] sm:$0xf]
        %v1881 = vld [vmem:[#allocation5 + $0x530] sm:$0xf]
        %v1882 = vpack.c.bf16 %v1861, %v1860
        %v1883 = vpack.c.bf16 %v1863, %v1862
        %v1884 = vld [vmem:[#allocation5 + $0x540] sm:$0xf]
        %v1885 = vld [vmem:[#allocation5 + $0x550] sm:$0xf]
        %v1886 = vld [vmem:[#allocation5 + $0x560] sm:$0xf]
        %v1887 = vld [vmem:[#allocation5 + $0x570] sm:$0xf]
        %v1888 = vld [vmem:[#allocation5 + $0x580] sm:$0xf]
        %v1889 = vld [vmem:[#allocation5 + $0x590] sm:$0xf]
        %v1890 = vld [vmem:[#allocation5 + $0x5a0] sm:$0xf]
        %v1891 = vld [vmem:[#allocation5 + $0x5b0] sm:$0xf]
        %v1892 = vld [vmem:[#allocation5 + $0x5c0] sm:$0xf]
        %v1893 = vld [vmem:[#allocation5 + $0x5d0] sm:$0xf]
        %v1894 = vld [vmem:[#allocation5 + $0x5e0] sm:$0xf]
        %v1895 = vld [vmem:[#allocation5 + $0x5f0] sm:$0xf]
        %v1896 = vld [vmem:[#allocation5 + $0x600] sm:$0xf]
        %v1897 = vld [vmem:[#allocation5 + $0x610] sm:$0xf]
        %v1898 = vld [vmem:[#allocation5 + $0x620] sm:$0xf]
        %v1899 = vld [vmem:[#allocation5 + $0x630] sm:$0xf]
        %v1916 = vunpack.c.l.b16 %v1884
        %v1917 = vunpack.c.l.b16 %v1885
        %v1918 = vunpack.c.l.b16 %v1886
        %v1919 = vunpack.c.l.b16 %v1887
        %v1920 = vunpack.c.l.b16 %v1888
        %v1921 = vunpack.c.l.b16 %v1889
        %v1922 = vunpack.c.l.b16 %v1890
        %v1923 = vunpack.c.l.b16 %v1891
        %v1924 = vunpack.c.l.b16 %v1892
        %v1925 = vunpack.c.l.b16 %v1893
        %v1926 = vunpack.c.l.b16 %v1894
        %v1927 = vunpack.c.l.b16 %v1895
        %v1928 = vunpack.c.l.b16 %v1896
        %v1929 = vunpack.c.l.b16 %v1897
        %v1930 = vunpack.c.l.b16 %v1898
        %v1931 = vunpack.c.l.b16 %v1899
        %v1932 = vpack.c.b16 %v1917, %v1916
        %v1933 = vpack.c.b16 %v1919, %v1918
        %v1934 = vpack.c.b16 %v1921, %v1920
        %v1935 = vpack.c.b16 %v1923, %v1922
        %v1936 = vpack.c.b16 %v1925, %v1924
        %v1937 = vpack.c.b16 %v1927, %v1926
        %v1938 = vpack.c.b16 %v1929, %v1928
        %v1939 = vpack.c.b16 %v1931, %v1930
        %1948 = vmatprep.subr.bf16.mxu0 0
        %1949 = vmatpush1.bf16.msra.mxu0 %v1932
        %1950 = vmatprep.subr.bf16.mxu0 0
        %1951 = vmatpush1.bf16.msra.mxu0 %v1933
        %1952 = vmatprep.subr.bf16.mxu0 0
        %1953 = vmatpush1.bf16.msra.mxu0 %v1934
        %1954 = vmatprep.subr.bf16.mxu0 0
        %1955 = vmatpush1.bf16.msra.mxu0 %v1935
        %1956 = vmatprep.subr.bf16.mxu0 0
        %1957 = vmatpush1.bf16.msra.mxu0 %v1936
        %1958 = vmatprep.subr.bf16.mxu0 0
        %1959 = vmatpush1.bf16.msra.mxu0 %v1937
        %1960 = vmatprep.subr.bf16.mxu0 0
        %1961 = vmatpush1.bf16.msra.mxu0 %v1938
        %1962 = vmatprep.subr.bf16.mxu0 0
        %1963 = vmatpush1.bf16.msra.mxu0 %v1939
        %1964 = vmatprep.subr.bf16.mxu0 0
        %1965 = vmatpush1.bf16.msra.mxu0 0
        %1966 = vmatprep.subr.bf16.mxu0 0
        %1967 = vmatpush1.bf16.msra.mxu0 0
        %1968 = vmatprep.subr.bf16.mxu0 0
        %1969 = vmatpush1.bf16.msra.mxu0 0
        %1970 = vmatprep.subr.bf16.mxu0 0
        %1971 = vmatpush1.bf16.msra.mxu0 0
        %1972 = vmatprep.subr.bf16.mxu0 0
        %1973 = vmatpush1.bf16.msra.mxu0 0
        %1974 = vmatprep.subr.bf16.mxu0 0
        %1975 = vmatpush1.bf16.msra.mxu0 0
        %1976 = vmatprep.subr.bf16.mxu0 0
        %1977 = vmatpush1.bf16.msra.mxu0 0
        %1978 = vmatprep.subr.bf16.mxu0 0
        %1979 = vmatpush1.bf16.msra.mxu0 0
        %1980 = vmatprep.mubr.bf16.mxu0 0
        %1981 = vmatmul.mubr.bf16.gmra.mrb[0].mxu0 %v1882
        %v1982 = vpop.f32.mrb[0].mxu0
        %v1983 = vadd.f32 0.0, %v1982
        %v1984 = vpop.f32.mrb[0].mxu0
        %v1985 = vpop.f32.mrb[0].mxu0
        %v1986 = vadd.f32 0.0, %v1985
        %v1987 = vpop.f32.mrb[0].mxu0
        %1988 = vmatprep.mubr.bf16.mxu0 0
        %1989 = vmatmul.mubr.bf16.gmra.mrb[0].mxu0 %v1883
        %v1990 = vpop.f32.mrb[0].mxu0
        %v1991 = vadd.f32 0.0, %v1990
        %v1992 = vpop.f32.mrb[0].mxu0
        %v1993 = vpop.f32.mrb[0].mxu0
        %v1994 = vadd.f32 0.0, %v1993
        %v1995 = vpop.f32.mrb[0].mxu0
        %1996 = vdwg.mxu0
        %v2013 = vunpack.c.l.b16 %v1866
        %v2014 = vunpack.c.l.b16 %v1867
        %v2015 = vunpack.c.l.b16 %v1868
        %v2016 = vunpack.c.l.b16 %v1869
        %v2017 = vunpack.c.l.b16 %v1870
        %v2018 = vunpack.c.l.b16 %v1871
        %v2019 = vunpack.c.l.b16 %v1872
        %v2020 = vunpack.c.l.b16 %v1873
        %v2021 = vunpack.c.l.b16 %v1874
        %v2022 = vunpack.c.l.b16 %v1875
        %v2023 = vunpack.c.l.b16 %v1876
        %v2024 = vunpack.c.l.b16 %v1877
        %v2025 = vunpack.c.l.b16 %v1878
        %v2026 = vunpack.c.l.b16 %v1879
        %v2027 = vunpack.c.l.b16 %v1880
        %v2028 = vunpack.c.l.b16 %v1881
        %v2029 = vpack.c.b16 %v2014, %v2013
        %v2030 = vpack.c.b16 %v2016, %v2015
        %v2031 = vpack.c.b16 %v2018, %v2017
        %v2032 = vpack.c.b16 %v2020, %v2019
        %v2033 = vpack.c.b16 %v2022, %v2021
        %v2034 = vpack.c.b16 %v2024, %v2023
        %v2035 = vpack.c.b16 %v2026, %v2025
        %v2036 = vpack.c.b16 %v2028, %v2027
        %2045 = vmatprep.subr.bf16.mxu0 0
        %2046 = vmatpush1.bf16.msra.mxu0 %v2029
        %2047 = vmatprep.subr.bf16.mxu0 0
        %2048 = vmatpush1.bf16.msra.mxu0 %v2030
        %2049 = vmatprep.subr.bf16.mxu0 0
        %2050 = vmatpush1.bf16.msra.mxu0 %v2031
        %2051 = vmatprep.subr.bf16.mxu0 0
        %2052 = vmatpush1.bf16.msra.mxu0 %v2032
        %2053 = vmatprep.subr.bf16.mxu0 0
        %2054 = vmatpush1.bf16.msra.mxu0 %v2033
        %2055 = vmatprep.subr.bf16.mxu0 0
        %2056 = vmatpush1.bf16.msra.mxu0 %v2034
        %2057 = vmatprep.subr.bf16.mxu0 0
        %2058 = vmatpush1.bf16.msra.mxu0 %v2035
        %2059 = vmatprep.subr.bf16.mxu0 0
        %2060 = vmatpush1.bf16.msra.mxu0 %v2036
        %2061 = vmatprep.subr.bf16.mxu0 0
        %2062 = vmatpush1.bf16.msra.mxu0 0
        %2063 = vmatprep.subr.bf16.mxu0 0
        %2064 = vmatpush1.bf16.msra.mxu0 0
        %2065 = vmatprep.subr.bf16.mxu0 0
        %2066 = vmatpush1.bf16.msra.mxu0 0
        %2067 = vmatprep.subr.bf16.mxu0 0
        %2068 = vmatpush1.bf16.msra.mxu0 0
        %2069 = vmatprep.subr.bf16.mxu0 0
        %2070 = vmatpush1.bf16.msra.mxu0 0
        %2071 = vmatprep.subr.bf16.mxu0 0
        %2072 = vmatpush1.bf16.msra.mxu0 0
        %2073 = vmatprep.subr.bf16.mxu0 0
        %2074 = vmatpush1.bf16.msra.mxu0 0
        %2075 = vmatprep.subr.bf16.mxu0 0
        %2076 = vmatpush1.bf16.msra.mxu0 0
        %2077 = vmatprep.mubr.bf16.mxu0 0
        %2078 = vmatmul.mubr.bf16.gmra.mrb[0].mxu0 %v1864
        %v2079 = vpop.f32.mrb[0].mxu0
        %v2080 = vadd.f32 %v1983, %v2079
        %v2081 = vpop.f32.mrb[0].mxu0
        %v2082 = vpop.f32.mrb[0].mxu0
        %v2083 = vadd.f32 %v1986, %v2082
        %v2084 = vpop.f32.mrb[0].mxu0
        %2085 = vmatprep.mubr.bf16.mxu0 0
        %2086 = vmatmul.mubr.bf16.gmra.mrb[0].mxu0 %v1865
        %v2087 = vpop.f32.mrb[0].mxu0
        %v2088 = vadd.f32 %v1991, %v2087
        %v2089 = vpop.f32.mrb[0].mxu0
        %v2090 = vpop.f32.mrb[0].mxu0
        %v2091 = vadd.f32 %v1994, %v2090
        %v2092 = vpop.f32.mrb[0].mxu0
        %2093 = vdwg.mxu0
        %v2094 = vld [vmem:[#allocation7 + $0x5] ss:$0 sm:$0xff]
        %v2095 = vadd.f32 %v2080, %v2094
        %v2096 = vadd.f32 %v2083, %v2094
        %v2097 = vadd.f32 %v2088, %v2094
        %v2098 = vadd.f32 %v2091, %v2094
        %v2099 = vlaneseq
        %v2100 = vand.u32 %v2099, 127
        %vm2101 = vcmp.lt.s32.totalorder %v2100, 8
        %v2102 = vsel %vm2101, %v2095, -1e+30
        %v2103 = vsel %vm2101, %v2096, -1e+30
        %v2104 = vsel %vm2101, %v2097, -1e+30
        %v2105 = vsel %vm2101, %v2098, -1e+30
        %2106 = vmax.xlane.f32.xlu0 %v2102
        %v2107 = vpop.xlane.xlu0 %2106
        %2108 = vmax.xlane.f32.xlu0 %v2103
        %v2109 = vpop.xlane.xlu0 %2108
        %2110 = vmax.xlane.f32.xlu0 %v2104
        %v2111 = vpop.xlane.xlu0 %2110
        %2112 = vmax.xlane.f32.xlu0 %v2105
        %v2113 = vpop.xlane.xlu0 %2112
        %v2114 = vsub.f32 %v2102, %v2107
        %v2115 = vsub.f32 %v2103, %v2109
        %v2116 = vsub.f32 %v2104, %v2111
        %v2117 = vsub.f32 %v2105, %v2113
        %v2118 = vmul.f32 %v2114, 1.442695
        %v2119 = vpow.pop %v2118
        %v2120 = vmul.f32 %v2115, 1.442695
        %v2121 = vpow.pop %v2120
        %v2122 = vmul.f32 %v2116, 1.442695
        %v2123 = vpow.pop %v2122
        %v2124 = vmul.f32 %v2117, 1.442695
        %v2125 = vpow.pop %v2124
        %2126 = vadd.xlane.f32.xlu0 %v2119
        %v2127 = vpop.xlane.xlu0 %2126
        %2128 = vadd.xlane.f32.xlu0 %v2121
        %v2129 = vpop.xlane.xlu0 %2128
        %2130 = vadd.xlane.f32.xlu0 %v2123
        %v2131 = vpop.xlane.xlu0 %2130
        %2132 = vadd.xlane.f32.xlu0 %v2125
        %v2133 = vpop.xlane.xlu0 %2132
        %v2134 = vrcp.pop %v2127
        %v2135 = vmul.f32 %v2119, %v2134
        %v2136 = vrcp.pop %v2129
        %v2137 = vmul.f32 %v2121, %v2136
        %v2138 = vrcp.pop %v2131
        %v2139 = vmul.f32 %v2123, %v2138
        %v2140 = vrcp.pop %v2133
        %v2141 = vmul.f32 %v2125, %v2140
        %v2142 = vsel %vm2101, %v2135, %v2095
        %v2143 = vsel %vm2101, %v2137, %v2096
        %v2144 = vsel %vm2101, %v2139, %v2097
        %v2145 = vsel %vm2101, %v2141, %v2098
        %2146 = vst [vmem:[%s215] sm:$0xff] %v2142
        %2147 = vst [vmem:[%s215 + $0x8] sm:$0xff] %v2143
        %2148 = vst [vmem:[%s215 + $0x10] sm:$0xff] %v2144
        %2149 = vst [vmem:[%s215 + $0x18] sm:$0xff] %v2145
        %s2150 = sand.u32 %s97, 1
        %s2151 = scalar_lea.sflag [#allocation4], %s2150
        %s2152 = sand.u32 %s97, 1
        %s2153 = smul.addr %s2152, 32
        %s2154 = scalar_lea.vmem [#allocation8], %s2153
        // Predicated region
        $region45: #{tpu_custom_call.1} parent=31 // pred_check
          %p2155 = pneg %p107
        $region46: #{tpu_custom_call.1} parent=31 // pred_check_branch
          %2157 = sbr.rel (%p2155) target = $region48
        $region47: #{tpu_custom_call.1} parent=31 // pred_region
          %s2158 = smul.u32 4, %s21
          %s2160 = ssub.s32 512, 512
          %2161 = vsyncadd %s2151, %s2160
          %s2162 = smul.addr %s2158, 128
          %s2163 = scalar_lea.hbm %s3, %s2162
          %s2164 = sshll.u32 %s2154, 4
          %s2165 = int_to_ptr.vmem [resolvable:$true] %s2164
          %2170 = dma.vmem_to_hbm [thread:$0]  %s2165, 512, %s2163, %s2151, 128, 128, 8
        $region48: #{tpu_custom_call.1} parent=31 // pred_fallthru
          _
      $region32: #{tpu_custom_call.1} parent=5 // pred_fallthru
        _
      %p2171 = scmp.le.s32.totalorder 2, %s16
      // Predicated region
      $region49: #{tpu_custom_call.1} parent=5 // pred_check
        %p2172 = pneg %p2171
      $region50: #{tpu_custom_call.1} parent=5 // pred_check_branch
        %2174 = sbr.rel (%p2172) target = $region52
      $region51: #{tpu_custom_call.1} parent=5 // pred_region
        %s2175 = ssub.s32 %s16, 2
        // Predicated region
        $region53: #{tpu_custom_call.1} parent=51 // pred_check
          %p2176 = pneg %p113
        $region54: #{tpu_custom_call.1} parent=51 // pred_check_branch
          %2178 = sbr.rel (%p2176) target = $region56
        $region55: #{tpu_custom_call.1} parent=51 // pred_region
          %s2179 = sand.u32 %s98, 1
          %s2180 = scalar_lea.sflag [#allocation4], %s2179
          %s2181 = sand.u32 %s98, 1
          %s2182 = smul.addr %s2181, 32
          %s2183 = scalar_lea.vmem [#allocation8], %s2182
          %2184 = dma.done %s2180, 512
        $region56: #{tpu_custom_call.1} parent=51 // pred_fallthru
          _
      $region52: #{tpu_custom_call.1} parent=5 // pred_fallthru
        _
    $region6: #{tpu_custom_call.1} parent=1 // loop_footer
      %s20 = sadd.s32 1, %s16
    $region7: #{tpu_custom_call.1} parent=1 // loop_footer_branch
      %15 = sbr.rel target = $region3
    $region8: #{tpu_custom_call.1} parent=1 // loop_exit
      _
    %2185 = vsyncpa [#allocation3], 1
    %s2186 = scalar_lea.sflag [#allocation3], 1
    %2187 = vsyncpa %s2186, 1
    %2188 = vsyncpa [#allocation6], 1
    %2189 = vsyncpa [#allocation4], 1
    %s2190 = scalar_lea.sflag [#allocation4], 1
    %2191 = vsyncpa %s2190, 1

</llo_original>
